<compile_context>
chip_gen: v7x
topology: tpu7x:2x2x1
jax: 0.10.0
libtpu: 0.0.40
codegen_flags: <defaults>
</compile_context>

<pallas_src>
import math
import jax
import jax.numpy as jnp
from jax import lax
from jax.experimental import pallas as pl
from jax.experimental.pallas import tpu as pltpu


# ----------------------------------------------------------------------------
# Pallas kernel: one LSTM layer, one time-chunk per grid step.
# grid = (batch_shards, time_chunks); state carried in VMEM scratch across chunks.
# ----------------------------------------------------------------------------
def lstm_chunk_kernel(x_ref, h0_ref, c0_ref, w_ih_ref, w_hh_ref, b_ref,
                      out_ref, hN_ref, cN_ref,
                      gx_sc, hout_sc, h_sc, c_sc):
    ci = pl.program_id(1)                        # time-chunk index (sequential recurrence)
    Bb, Tc, In = x_ref.shape
    H = h0_ref.shape[-1]

    @pl.when(ci == 0)
    def _():                                     # (re)load initial state for this batch shard
        h_sc[...] = h0_ref[...].astype(jnp.float32)
        c_sc[...] = c0_ref[...].astype(jnp.float32)

    # ---- Phase 1: chunk-wide input projection, hoisted out of the recurrence --------------
    # One (Tc*Bb, In) x (In, 4H) matmul instead of Tc tiny (Bb, In) matmuls.
    x_tbi = jnp.transpose(x_ref[...].astype(jnp.float32), (1, 0, 2))       # (Tc, Bb, In)
    gx = jnp.dot(x_tbi.reshape(Tc * Bb, In), w_ih_ref[...],
                 preferred_element_type=jnp.float32) + b_ref[...]           # (Tc*Bb, 4H)
    gx_sc[...] = gx.reshape(Tc, Bb, 4 * H)

    # ---- Phase 2: sequential h-recurrence; only h @ W_hh^T per step ------------------------
    w_hh = w_hh_ref[...]                         # hoist the weight load out of the loop

    def step(s, carry):
        h, c = carry
        gates = gx_sc[s] + jnp.dot(h, w_hh, preferred_element_type=jnp.float32)   # (Bb, 4H)
        # NOTE: gate slices are tile-aligned (free) only when H % 128 == 0.
        i_g = jax.nn.sigmoid(gates[:, 0 * H:1 * H])
        f_g = jax.nn.sigmoid(gates[:, 1 * H:2 * H])
        g_g = jnp.tanh(gates[:, 2 * H:3 * H])
        o_g = jax.nn.sigmoid(gates[:, 3 * H:4 * H])
        c_new = f_g * c + i_g * g_g
        h_new = o_g * jnp.tanh(c_new)
        hout_sc[s] = h_new                       # leading-axis store to scratch (cheap)
        return h_new, c_new

    h_fin, c_fin = lax.fori_loop(0, Tc, step, (h_sc[...], c_sc[...]),
                                 unroll=(Tc <= 32))

    h_sc[...] = h_fin                            # carry state to the next chunk
    c_sc[...] = c_fin

    # Single lane-dense block store directly in the (B, T, H) "viewed" layout.
    out_ref[...] = jnp.transpose(hout_sc[...], (1, 0, 2)).astype(out_ref.dtype)

    @pl.when(ci == pl.num_programs(1) - 1)       # final state: write once, not every step
    def _():
        hN_ref[...] = h_fin.astype(hN_ref.dtype)
        cN_ref[...] = c_fin.astype(cN_ref.dtype)


def _pick_time_chunk(T, target=64):
    """Largest Tc <= target that divides T and keeps (Tc, ...) blocks (8,128)-legal."""
    if T <= target:
        return T
    for tc in range(target, 7, -1):
        if T % tc == 0 and tc % 8 == 0:
            return tc
    return T


def lstm_layer(x_btI, h0, c0, w_ih_t, w_hh_t, b, *, time_chunk=64):
    """One LSTM layer over the viewed (B, T, In) input.

    Returns (out (B, T, H), hN (B, H), cN (B, H)).
    """
    B, T, In = x_btI.shape
    H = h0.shape[-1]
    dt = x_btI.dtype

    Tc = _pick_time_chunk(T, time_chunk)
    n_chunks = T // Tc
    # Batch shards: independent rows -> 'parallel' axis that v7x's two TensorCores can split.
    # Only shard when the shard size keeps the (8,128) sublane rule; no-op on v5e/v6e.
    n_b = 2 if (B % 16 == 0) else 1
    Bb = B // n_b

    out, hN, cN = pl.pallas_call(
        lstm_chunk_kernel,
        out_shape=(jax.ShapeDtypeStruct((B, T, H), dt),
                   jax.ShapeDtypeStruct((B, H), dt),
                   jax.ShapeDtypeStruct((B, H), dt)),
        grid_spec=pltpu.PrefetchScalarGridSpec(
            num_scalar_prefetch=0,
            grid=(n_b, n_chunks),
            in_specs=[
                pl.BlockSpec((Bb, Tc, In), lambda bi, ci: (bi, ci, 0)),   # x chunk (viewed layout)
                pl.BlockSpec((Bb, H), lambda bi, ci: (bi, 0)),            # h0
                pl.BlockSpec((Bb, H), lambda bi, ci: (bi, 0)),            # c0
                # Grid-invariant weights. For large H, cast to bf16 and/or single-buffer
                # (pipeline_mode=pl.Buffered(1)) to halve resident VMEM; kept f32 here to
                # preserve reference numerics at these small shapes.
                pl.BlockSpec((In, 4 * H), lambda bi, ci: (0, 0)),         # W_ih^T
                pl.BlockSpec((H, 4 * H), lambda bi, ci: (0, 0)),          # W_hh^T
                pl.BlockSpec((1, 4 * H), lambda bi, ci: (0, 0)),          # b_ih + b_hh
            ],
            out_specs=[
                pl.BlockSpec((Bb, Tc, H), lambda bi, ci: (bi, ci, 0)),    # h_t sequence
                pl.BlockSpec((Bb, H), lambda bi, ci: (bi, 0)),            # final h
                pl.BlockSpec((Bb, H), lambda bi, ci: (bi, 0)),            # final c
            ],
            scratch_shapes=[
                pltpu.VMEM((Tc, Bb, 4 * H), jnp.float32),   # hoisted input projection
                pltpu.VMEM((Tc, Bb, H), jnp.float32),       # per-step h for this chunk
                pltpu.VMEM((Bb, H), jnp.float32),           # carried h
                pltpu.VMEM((Bb, H), jnp.float32),           # carried c
            ],
        ),
        compiler_params=pltpu.CompilerParams(
            # batch shards are independent; the time-chunk axis is a true recurrence
            dimension_semantics=("parallel", "arbitrary")),
    )(x_btI, h0, c0, w_ih_t, w_hh_t, b)
    return out, hN, cN


# ----------------------------------------------------------------------------
# RNNModel (eval-mode forward; decoder initialized but never applied, as in the reference)
# ----------------------------------------------------------------------------
class RNNModel:
    def __init__(self, ntoken, ninp, nhid, nlayers, key):
        self.ntoken, self.ninp, self.nhid, self.nlayers = ntoken, ninp, nhid, nlayers
        keys = jax.random.split(key, 2 + 4 * nlayers)
        initrange = 0.1
        self.encoder_w = jax.random.uniform(keys[0], (ntoken, ninp),
                                            jnp.float32, -initrange, initrange)
        # decoder initialized but never used in forward()
        self.decoder_w = jax.random.uniform(keys[1], (ntoken, nhid),
                                            jnp.float32, -initrange, initrange)
        self.decoder_b = jnp.zeros((ntoken,), jnp.float32)

        self.layers = []
        for l in range(nlayers):
            in_size = ninp if l == 0 else nhid
            hid_size = nhid                                # tie_weights=False -> all nhid
            s = 1.0 / math.sqrt(hid_size)
            k = keys[2 + 4 * l: 2 + 4 * (l + 1)]
            w_ih = jax.random.uniform(k[0], (4 * hid_size, in_size), jnp.float32, -s, s)
            w_hh = jax.random.uniform(k[1], (4 * hid_size, hid_size), jnp.float32, -s, s)
            b_ih = jax.random.uniform(k[2], (4 * hid_size,), jnp.float32, -s, s)
            b_hh = jax.random.uniform(k[3], (4 * hid_size,), jnp.float32, -s, s)
            self.layers.append(dict(
                w_ih_t=jnp.transpose(w_ih),                        # (In, 4H)
                w_hh_t=jnp.transpose(w_hh),                        # (H, 4H)
                b=(b_ih + b_hh).reshape(1, 4 * hid_size),          # (1, 4H)
                hid=hid_size,
            ))

    def init_hidden(self, bsz):
        return [(jnp.zeros((1, bsz, self.layers[l]["hid"]), jnp.float32),
                 jnp.zeros((1, bsz, self.layers[l]["hid"]), jnp.float32))
                for l in range(self.nlayers)]

    def forward(self, tokens, hidden):
        # tokens: (T, B) int32; embedding gather stays in XLA (tiny, no kernel needed).
        T, B = tokens.shape
        emb = jnp.take(self.encoder_w, tokens, axis=0)              # (T, B, ninp)
        raw_output = emb
        new_hidden = []
        for l, p in enumerate(self.layers):
            In = raw_output.shape[-1]
            H = p["hid"]
            h0, c0 = hidden[l]
            # Faithful LSTMCellWrapper .view(batch, seq, -1): flat reinterpretation (NOT a
            # transpose).  The kernel consumes this layout directly -> no HBM transposes.
            x_view = jnp.reshape(raw_output, (B, T, In))
            out_btH, hN, cN = lstm_layer(x_view,
                                         jnp.reshape(h0, (B, H)),
                                         jnp.reshape(c0, (B, H)),
                                         p["w_ih_t"], p["w_hh_t"], p["b"])
            # output.view(seq, batch, -1): flat reinterpretation back (cancels between layers).
            raw_output = jnp.reshape(out_btH, (T, B, H))
            new_hidden.append((jnp.reshape(hN, (1, B, H)),
                               jnp.reshape(cN, (1, B, H))))
        result = jnp.reshape(raw_output, (T * B, raw_output.shape[-1]))
        return result, new_hidden


# ----------------------------------------------------------------------------
# Pure-JAX reference (mirrors the eval-mode PyTorch forward) for a sanity check.
# ----------------------------------------------------------------------------
def _ref_forward(model, tokens, hidden):
    T, B = tokens.shape
    raw = jnp.take(model.encoder_w, tokens, axis=0)
    hp = jax.lax.Precision.HIGHEST
    new_hidden = []
    for l, p in enumerate(model.layers):
        In = raw.shape[-1]
        H = p["hid"]
        h = jnp.reshape(hidden[l][0], (B, H))
        c = jnp.reshape(hidden[l][1], (B, H))
        x_view = jnp.reshape(raw, (B, T, In))
        outs = []
        for s in range(T):
            gates = (jnp.dot(x_view[:, s, :], p["w_ih_t"], precision=hp)
                     + jnp.dot(h, p["w_hh_t"], precision=hp) + p["b"])
            i = jax.nn.sigmoid(gates[:, 0 * H:1 * H])
            f = jax.nn.sigmoid(gates[:, 1 * H:2 * H])
            g = jnp.tanh(gates[:, 2 * H:3 * H])
            o = jax.nn.sigmoid(gates[:, 3 * H:4 * H])
            c = f * c + i * g
            h = o * jnp.tanh(c)
            outs.append(h)
        out_bth = jnp.stack(outs, axis=1)             # (B, T, H)
        raw = jnp.reshape(out_bth, (T, B, H))
        new_hidden.append((h.reshape(1, B, H), c.reshape(1, B, H)))
    return jnp.reshape(raw, (T * B, raw.shape[-1])), new_hidden


if __name__ == "__main__":
    ntoken, ninp, nhid, nlayers = 50, 32, 32, 2
    T, B = 8, 2

    key = jax.random.PRNGKey(0)
    k_model, k_tok = jax.random.split(key)
    model = RNNModel(ntoken, ninp, nhid, nlayers, k_model)

    tokens = jax.random.randint(k_tok, (T, B), 0, ntoken, dtype=jnp.int32)
    hidden = model.init_hidden(B)

    result, new_hidden = model.forward(tokens, hidden)
    jax.block_until_ready(result)
    for h, c in new_hidden:
        jax.block_until_ready(h)
        jax.block_until_ready(c)

    assert result.shape == (T * B, nhid), result.shape

    # Loose-tolerance sanity check vs pure-JAX reference (Pallas f32 MXU path vs XLA dot
    # precision differ slightly; structural/layout bugs would blow way past this).
    ref_result, _ = _ref_forward(model, tokens, hidden)
    assert jnp.allclose(result, ref_result, rtol=5e-2, atol=5e-2), (
        float(jnp.max(jnp.abs(result - ref_result))))

    print("KERNEL_OK")
</pallas_src>

<mosaic_0001>
module attributes {stable_mosaic.version = 11 : i64} {
  func.func @lstm_chunk_kernel(%arg0: i32, %arg1: i32, %arg2: memref<2x8x32xf32, #tpu.memory_space<vmem>>, %arg3: memref<2x32xf32, #tpu.memory_space<vmem>>, %arg4: memref<2x32xf32, #tpu.memory_space<vmem>>, %arg5: memref<32x128xf32, #tpu.memory_space<vmem>>, %arg6: memref<32x128xf32, #tpu.memory_space<vmem>>, %arg7: memref<1x128xf32, #tpu.memory_space<vmem>>, %arg8: memref<2x8x32xf32, #tpu.memory_space<vmem>>, %arg9: memref<2x32xf32, #tpu.memory_space<vmem>>, %arg10: memref<2x32xf32, #tpu.memory_space<vmem>>, %arg11: memref<8x2x128xf32, #tpu.memory_space<vmem>>, %arg12: memref<8x2x32xf32, #tpu.memory_space<vmem>>, %arg13: memref<2x32xf32, #tpu.memory_space<vmem>>, %arg14: memref<2x32xf32, #tpu.memory_space<vmem>>) attributes {dimension_semantics = [#tpu.dimension_semantics<parallel>, #tpu.dimension_semantics<arbitrary>], iteration_bounds = array<i64: 1, 1>, scalar_prefetch = 0 : i64, scratch_operands = 4 : i64, tpu.core_type = #tpu.core_type<tc>, window_params = [{transform_indices = @transform_0, window_bounds = array<i64: 2, 8, 32>}, {transform_indices = @transform_1, window_bounds = array<i64: 2, 32>}, {transform_indices = @transform_2, window_bounds = array<i64: 2, 32>}, {pipeline_mode = #tpu.pipeline_mode<synchronous>, transform_indices = @transform_3, window_bounds = array<i64: 32, 128>}, {pipeline_mode = #tpu.pipeline_mode<synchronous>, transform_indices = @transform_4, window_bounds = array<i64: 32, 128>}, {pipeline_mode = #tpu.pipeline_mode<synchronous>, transform_indices = @transform_5, window_bounds = array<i64: 1, 128>}, {transform_indices = @transform_6, window_bounds = array<i64: 2, 8, 32>}, {transform_indices = @transform_7, window_bounds = array<i64: 2, 32>}, {transform_indices = @transform_8, window_bounds = array<i64: 2, 32>}]} {
    %c0_i32 = arith.constant 0 : i32
    %0 = arith.cmpi eq, %arg1, %c0_i32 : i32
    %1 = arith.extui %0 : i1 to i32
    %c0_i32_0 = arith.constant 0 : i32
    %2 = arith.cmpi ne, %1, %c0_i32_0 : i32
    scf.if %2 {
      %c0_93 = arith.constant 0 : index
      %c0_94 = arith.constant 0 : index
      %296 = vector.load %arg3[%c0_93, %c0_94] : memref<2x32xf32, #tpu.memory_space<vmem>>, vector<2x32xf32>
      %c0_95 = arith.constant 0 : index
      %c0_96 = arith.constant 0 : index
      %297 = vector.load %arg13[%c0_95, %c0_96] : memref<2x32xf32, #tpu.memory_space<vmem>>, vector<2x32xf32>
      tpu.vector_store %arg13[%c0_95, %c0_96], %296 {strides = array<i32>} : memref<2x32xf32, #tpu.memory_space<vmem>>, vector<2x32xf32>,
      %c0_97 = arith.constant 0 : index
      %c0_98 = arith.constant 0 : index
      %298 = vector.load %arg4[%c0_97, %c0_98] : memref<2x32xf32, #tpu.memory_space<vmem>>, vector<2x32xf32>
      %c0_99 = arith.constant 0 : index
      %c0_100 = arith.constant 0 : index
      %299 = vector.load %arg14[%c0_99, %c0_100] : memref<2x32xf32, #tpu.memory_space<vmem>>, vector<2x32xf32>
      tpu.vector_store %arg14[%c0_99, %c0_100], %298 {strides = array<i32>} : memref<2x32xf32, #tpu.memory_space<vmem>>, vector<2x32xf32>,
    } else {
    }
    %c0 = arith.constant 0 : index
    %c0_1 = arith.constant 0 : index
    %c0_2 = arith.constant 0 : index
    %3 = vector.load %arg2[%c0, %c0_1, %c0_2] : memref<2x8x32xf32, #tpu.memory_space<vmem>>, vector<2x8x32xf32>
    %4 = tpu.transpose %3, [1, 0, 2] : vector<2x8x32xf32> -> vector<8x2x32xf32>
    %5 = vector.shape_cast %4 : vector<8x2x32xf32> to vector<16x32xf32>
    %c0_3 = arith.constant 0 : index
    %c0_4 = arith.constant 0 : index
    %6 = vector.load %arg5[%c0_3, %c0_4] : memref<32x128xf32, #tpu.memory_space<vmem>>, vector<32x128xf32>
    %cst = arith.constant dense<0.000000e+00> : vector<16x128xf32>
    %7 = tpu.matmul %5, %6, %cst {dimension_numbers = #tpu.dot_dimension_numbers<[1], [0], [0], [1], [0, 0, 1, 1], [], []>} : vector<16x32xf32>, vector<32x128xf32>, vector<16x128xf32> -> vector<16x128xf32>
    %c0_5 = arith.constant 0 : index
    %c0_6 = arith.constant 0 : index
    %8 = vector.load %arg7[%c0_5, %c0_6] : memref<1x128xf32, #tpu.memory_space<vmem>>, vector<1x128xf32>
    %9 = vector.broadcast %8 : vector<1x128xf32> to vector<16x128xf32>
    %10 = arith.addf %7, %9 : vector<16x128xf32>
    %11 = vector.shape_cast %10 : vector<16x128xf32> to vector<8x2x128xf32>
    %c0_7 = arith.constant 0 : index
    %c0_8 = arith.constant 0 : index
    %c0_9 = arith.constant 0 : index
    %12 = vector.load %arg11[%c0_7, %c0_8, %c0_9] : memref<8x2x128xf32, #tpu.memory_space<vmem>>, vector<8x2x128xf32>
    tpu.vector_store %arg11[%c0_7, %c0_8, %c0_9], %11 {strides = array<i32>} : memref<8x2x128xf32, #tpu.memory_space<vmem>>, vector<8x2x128xf32>,
    %c0_10 = arith.constant 0 : index
    %c0_11 = arith.constant 0 : index
    %13 = vector.load %arg6[%c0_10, %c0_11] : memref<32x128xf32, #tpu.memory_space<vmem>>, vector<32x128xf32>
    %c0_12 = arith.constant 0 : index
    %c0_13 = arith.constant 0 : index
    %14 = vector.load %arg13[%c0_12, %c0_13] : memref<2x32xf32, #tpu.memory_space<vmem>>, vector<2x32xf32>
    %c0_14 = arith.constant 0 : index
    %c0_15 = arith.constant 0 : index
    %15 = vector.load %arg14[%c0_14, %c0_15] : memref<2x32xf32, #tpu.memory_space<vmem>>, vector<2x32xf32>
    %c0_i32_16 = arith.constant 0 : i32
    %16 = arith.index_cast %c0_i32_16 : i32 to index
    %c0_17 = arith.constant 0 : index
    %c0_18 = arith.constant 0 : index
    %17 = vector.load %arg11[%16, %c0_17, %c0_18] : memref<8x2x128xf32, #tpu.memory_space<vmem>>, vector<1x2x128xf32>
    %18 = vector.shape_cast %17 : vector<1x2x128xf32> to vector<2x128xf32>
    %cst_19 = arith.constant dense<0.000000e+00> : vector<2x128xf32>
    %19 = tpu.matmul %14, %13, %cst_19 {dimension_numbers = #tpu.dot_dimension_numbers<[1], [0], [0], [1], [0, 0, 1, 1], [], []>} : vector<2x32xf32>, vector<32x128xf32>, vector<2x128xf32> -> vector<2x128xf32>
    %20 = arith.addf %18, %19 : vector<2x128xf32>
    %21 = vector.extract_strided_slice %20 {offsets = [0, 0], sizes = [2, 32], strides = [1, 1]} : vector<2x128xf32> to vector<2x32xf32>
    %22 = arith.negf %21 : vector<2x32xf32>
    %23 = math.exp %22 : vector<2x32xf32>
    %cst_20 = arith.constant 1.000000e+00 : f32
    %24 = vector.broadcast %cst_20 : f32 to vector<2x32xf32>
    %25 = arith.addf %24, %23 : vector<2x32xf32>
    %26 = arith.divf %24, %25 : vector<2x32xf32>
    %27 = vector.extract_strided_slice %20 {offsets = [0, 32], sizes = [2, 32], strides = [1, 1]} : vector<2x128xf32> to vector<2x32xf32>
    %28 = arith.negf %27 : vector<2x32xf32>
    %29 = math.exp %28 : vector<2x32xf32>
    %cst_21 = arith.constant 1.000000e+00 : f32
    %30 = vector.broadcast %cst_21 : f32 to vector<2x32xf32>
    %31 = arith.addf %30, %29 : vector<2x32xf32>
    %32 = arith.divf %30, %31 : vector<2x32xf32>
    %33 = vector.extract_strided_slice %20 {offsets = [0, 64], sizes = [2, 32], strides = [1, 1]} : vector<2x128xf32> to vector<2x32xf32>
    %34 = math.tanh %33 : vector<2x32xf32>
    %35 = vector.extract_strided_slice %20 {offsets = [0, 96], sizes = [2, 32], strides = [1, 1]} : vector<2x128xf32> to vector<2x32xf32>
    %36 = arith.negf %35 : vector<2x32xf32>
    %37 = math.exp %36 : vector<2x32xf32>
    %cst_22 = arith.constant 1.000000e+00 : f32
    %38 = vector.broadcast %cst_22 : f32 to vector<2x32xf32>
    %39 = arith.addf %38, %37 : vector<2x32xf32>
    %40 = arith.divf %38, %39 : vector<2x32xf32>
    %41 = arith.mulf %32, %15 : vector<2x32xf32>
    %42 = arith.mulf %26, %34 : vector<2x32xf32>
    %43 = arith.addf %41, %42 : vector<2x32xf32>
    %44 = math.tanh %43 : vector<2x32xf32>
    %45 = arith.mulf %40, %44 : vector<2x32xf32>
    %46 = arith.index_cast %c0_i32_16 : i32 to index
    %c0_23 = arith.constant 0 : index
    %c0_24 = arith.constant 0 : index
    %47 = vector.load %arg12[%46, %c0_23, %c0_24] : memref<8x2x32xf32, #tpu.memory_space<vmem>>, vector<1x2x32xf32>
    %48 = vector.shape_cast %47 : vector<1x2x32xf32> to vector<2x32xf32>
    %49 = vector.shape_cast %45 : vector<2x32xf32> to vector<1x2x32xf32>
    tpu.vector_store %arg12[%46, %c0_23, %c0_24], %49 {strides = array<i32>} : memref<8x2x32xf32, #tpu.memory_space<vmem>>, vector<1x2x32xf32>,
    %c1_i32 = arith.constant 1 : i32
    %50 = arith.index_cast %c1_i32 : i32 to index
    %c0_25 = arith.constant 0 : index
    %c0_26 = arith.constant 0 : index
    %51 = vector.load %arg11[%50, %c0_25, %c0_26] : memref<8x2x128xf32, #tpu.memory_space<vmem>>, vector<1x2x128xf32>
    %52 = vector.shape_cast %51 : vector<1x2x128xf32> to vector<2x128xf32>
    %cst_27 = arith.constant dense<0.000000e+00> : vector<2x128xf32>
    %53 = tpu.matmul %45, %13, %cst_27 {dimension_numbers = #tpu.dot_dimension_numbers<[1], [0], [0], [1], [0, 0, 1, 1], [], []>} : vector<2x32xf32>, vector<32x128xf32>, vector<2x128xf32> -> vector<2x128xf32>
    %54 = arith.addf %52, %53 : vector<2x128xf32>
    %55 = vector.extract_strided_slice %54 {offsets = [0, 0], sizes = [2, 32], strides = [1, 1]} : vector<2x128xf32> to vector<2x32xf32>
    %56 = arith.negf %55 : vector<2x32xf32>
    %57 = math.exp %56 : vector<2x32xf32>
    %cst_28 = arith.constant 1.000000e+00 : f32
    %58 = vector.broadcast %cst_28 : f32 to vector<2x32xf32>
    %59 = arith.addf %58, %57 : vector<2x32xf32>
    %60 = arith.divf %58, %59 : vector<2x32xf32>
    %61 = vector.extract_strided_slice %54 {offsets = [0, 32], sizes = [2, 32], strides = [1, 1]} : vector<2x128xf32> to vector<2x32xf32>
    %62 = arith.negf %61 : vector<2x32xf32>
    %63 = math.exp %62 : vector<2x32xf32>
    %cst_29 = arith.constant 1.000000e+00 : f32
    %64 = vector.broadcast %cst_29 : f32 to vector<2x32xf32>
    %65 = arith.addf %64, %63 : vector<2x32xf32>
    %66 = arith.divf %64, %65 : vector<2x32xf32>
    %67 = vector.extract_strided_slice %54 {offsets = [0, 64], sizes = [2, 32], strides = [1, 1]} : vector<2x128xf32> to vector<2x32xf32>
    %68 = math.tanh %67 : vector<2x32xf32>
    %69 = vector.extract_strided_slice %54 {offsets = [0, 96], sizes = [2, 32], strides = [1, 1]} : vector<2x128xf32> to vector<2x32xf32>
    %70 = arith.negf %69 : vector<2x32xf32>
    %71 = math.exp %70 : vector<2x32xf32>
    %cst_30 = arith.constant 1.000000e+00 : f32
    %72 = vector.broadcast %cst_30 : f32 to vector<2x32xf32>
    %73 = arith.addf %72, %71 : vector<2x32xf32>
    %74 = arith.divf %72, %73 : vector<2x32xf32>
    %75 = arith.mulf %66, %43 : vector<2x32xf32>
    %76 = arith.mulf %60, %68 : vector<2x32xf32>
    %77 = arith.addf %75, %76 : vector<2x32xf32>
    %78 = math.tanh %77 : vector<2x32xf32>
    %79 = arith.mulf %74, %78 : vector<2x32xf32>
    %80 = arith.index_cast %c1_i32 : i32 to index
    %c0_31 = arith.constant 0 : index
    %c0_32 = arith.constant 0 : index
    %81 = vector.load %arg12[%80, %c0_31, %c0_32] : memref<8x2x32xf32, #tpu.memory_space<vmem>>, vector<1x2x32xf32>
    %82 = vector.shape_cast %81 : vector<1x2x32xf32> to vector<2x32xf32>
    %83 = vector.shape_cast %79 : vector<2x32xf32> to vector<1x2x32xf32>
    tpu.vector_store %arg12[%80, %c0_31, %c0_32], %83 {strides = array<i32>} : memref<8x2x32xf32, #tpu.memory_space<vmem>>, vector<1x2x32xf32>,
    %c2_i32 = arith.constant 2 : i32
    %84 = arith.index_cast %c2_i32 : i32 to index
    %c0_33 = arith.constant 0 : index
    %c0_34 = arith.constant 0 : index
    %85 = vector.load %arg11[%84, %c0_33, %c0_34] : memref<8x2x128xf32, #tpu.memory_space<vmem>>, vector<1x2x128xf32>
    %86 = vector.shape_cast %85 : vector<1x2x128xf32> to vector<2x128xf32>
    %cst_35 = arith.constant dense<0.000000e+00> : vector<2x128xf32>
    %87 = tpu.matmul %79, %13, %cst_35 {dimension_numbers = #tpu.dot_dimension_numbers<[1], [0], [0], [1], [0, 0, 1, 1], [], []>} : vector<2x32xf32>, vector<32x128xf32>, vector<2x128xf32> -> vector<2x128xf32>
    %88 = arith.addf %86, %87 : vector<2x128xf32>
    %89 = vector.extract_strided_slice %88 {offsets = [0, 0], sizes = [2, 32], strides = [1, 1]} : vector<2x128xf32> to vector<2x32xf32>
    %90 = arith.negf %89 : vector<2x32xf32>
    %91 = math.exp %90 : vector<2x32xf32>
    %cst_36 = arith.constant 1.000000e+00 : f32
    %92 = vector.broadcast %cst_36 : f32 to vector<2x32xf32>
    %93 = arith.addf %92, %91 : vector<2x32xf32>
    %94 = arith.divf %92, %93 : vector<2x32xf32>
    %95 = vector.extract_strided_slice %88 {offsets = [0, 32], sizes = [2, 32], strides = [1, 1]} : vector<2x128xf32> to vector<2x32xf32>
    %96 = arith.negf %95 : vector<2x32xf32>
    %97 = math.exp %96 : vector<2x32xf32>
    %cst_37 = arith.constant 1.000000e+00 : f32
    %98 = vector.broadcast %cst_37 : f32 to vector<2x32xf32>
    %99 = arith.addf %98, %97 : vector<2x32xf32>
    %100 = arith.divf %98, %99 : vector<2x32xf32>
    %101 = vector.extract_strided_slice %88 {offsets = [0, 64], sizes = [2, 32], strides = [1, 1]} : vector<2x128xf32> to vector<2x32xf32>
    %102 = math.tanh %101 : vector<2x32xf32>
    %103 = vector.extract_strided_slice %88 {offsets = [0, 96], sizes = [2, 32], strides = [1, 1]} : vector<2x128xf32> to vector<2x32xf32>
    %104 = arith.negf %103 : vector<2x32xf32>
    %105 = math.exp %104 : vector<2x32xf32>
    %cst_38 = arith.constant 1.000000e+00 : f32
    %106 = vector.broadcast %cst_38 : f32 to vector<2x32xf32>
    %107 = arith.addf %106, %105 : vector<2x32xf32>
    %108 = arith.divf %106, %107 : vector<2x32xf32>
    %109 = arith.mulf %100, %77 : vector<2x32xf32>
    %110 = arith.mulf %94, %102 : vector<2x32xf32>
    %111 = arith.addf %109, %110 : vector<2x32xf32>
    %112 = math.tanh %111 : vector<2x32xf32>
    %113 = arith.mulf %108, %112 : vector<2x32xf32>
    %114 = arith.index_cast %c2_i32 : i32 to index
    %c0_39 = arith.constant 0 : index
    %c0_40 = arith.constant 0 : index
    %115 = vector.load %arg12[%114, %c0_39, %c0_40] : memref<8x2x32xf32, #tpu.memory_space<vmem>>, vector<1x2x32xf32>
    %116 = vector.shape_cast %115 : vector<1x2x32xf32> to vector<2x32xf32>
    %117 = vector.shape_cast %113 : vector<2x32xf32> to vector<1x2x32xf32>
    tpu.vector_store %arg12[%114, %c0_39, %c0_40], %117 {strides = array<i32>} : memref<8x2x32xf32, #tpu.memory_space<vmem>>, vector<1x2x32xf32>,
    %c3_i32 = arith.constant 3 : i32
    %118 = arith.index_cast %c3_i32 : i32 to index
    %c0_41 = arith.constant 0 : index
    %c0_42 = arith.constant 0 : index
    %119 = vector.load %arg11[%118, %c0_41, %c0_42] : memref<8x2x128xf32, #tpu.memory_space<vmem>>, vector<1x2x128xf32>
    %120 = vector.shape_cast %119 : vector<1x2x128xf32> to vector<2x128xf32>
    %cst_43 = arith.constant dense<0.000000e+00> : vector<2x128xf32>
    %121 = tpu.matmul %113, %13, %cst_43 {dimension_numbers = #tpu.dot_dimension_numbers<[1], [0], [0], [1], [0, 0, 1, 1], [], []>} : vector<2x32xf32>, vector<32x128xf32>, vector<2x128xf32> -> vector<2x128xf32>
    %122 = arith.addf %120, %121 : vector<2x128xf32>
    %123 = vector.extract_strided_slice %122 {offsets = [0, 0], sizes = [2, 32], strides = [1, 1]} : vector<2x128xf32> to vector<2x32xf32>
    %124 = arith.negf %123 : vector<2x32xf32>
    %125 = math.exp %124 : vector<2x32xf32>
    %cst_44 = arith.constant 1.000000e+00 : f32
    %126 = vector.broadcast %cst_44 : f32 to vector<2x32xf32>
    %127 = arith.addf %126, %125 : vector<2x32xf32>
    %128 = arith.divf %126, %127 : vector<2x32xf32>
    %129 = vector.extract_strided_slice %122 {offsets = [0, 32], sizes = [2, 32], strides = [1, 1]} : vector<2x128xf32> to vector<2x32xf32>
    %130 = arith.negf %129 : vector<2x32xf32>
    %131 = math.exp %130 : vector<2x32xf32>
    %cst_45 = arith.constant 1.000000e+00 : f32
    %132 = vector.broadcast %cst_45 : f32 to vector<2x32xf32>
    %133 = arith.addf %132, %131 : vector<2x32xf32>
    %134 = arith.divf %132, %133 : vector<2x32xf32>
    %135 = vector.extract_strided_slice %122 {offsets = [0, 64], sizes = [2, 32], strides = [1, 1]} : vector<2x128xf32> to vector<2x32xf32>
    %136 = math.tanh %135 : vector<2x32xf32>
    %137 = vector.extract_strided_slice %122 {offsets = [0, 96], sizes = [2, 32], strides = [1, 1]} : vector<2x128xf32> to vector<2x32xf32>
    %138 = arith.negf %137 : vector<2x32xf32>
    %139 = math.exp %138 : vector<2x32xf32>
    %cst_46 = arith.constant 1.000000e+00 : f32
    %140 = vector.broadcast %cst_46 : f32 to vector<2x32xf32>
    %141 = arith.addf %140, %139 : vector<2x32xf32>
    %142 = arith.divf %140, %141 : vector<2x32xf32>
    %143 = arith.mulf %134, %111 : vector<2x32xf32>
    %144 = arith.mulf %128, %136 : vector<2x32xf32>
    %145 = arith.addf %143, %144 : vector<2x32xf32>
    %146 = math.tanh %145 : vector<2x32xf32>
    %147 = arith.mulf %142, %146 : vector<2x32xf32>
    %148 = arith.index_cast %c3_i32 : i32 to index
    %c0_47 = arith.constant 0 : index
    %c0_48 = arith.constant 0 : index
    %149 = vector.load %arg12[%148, %c0_47, %c0_48] : memref<8x2x32xf32, #tpu.memory_space<vmem>>, vector<1x2x32xf32>
    %150 = vector.shape_cast %149 : vector<1x2x32xf32> to vector<2x32xf32>
    %151 = vector.shape_cast %147 : vector<2x32xf32> to vector<1x2x32xf32>
    tpu.vector_store %arg12[%148, %c0_47, %c0_48], %151 {strides = array<i32>} : memref<8x2x32xf32, #tpu.memory_space<vmem>>, vector<1x2x32xf32>,
    %c4_i32 = arith.constant 4 : i32
    %152 = arith.index_cast %c4_i32 : i32 to index
    %c0_49 = arith.constant 0 : index
    %c0_50 = arith.constant 0 : index
    %153 = vector.load %arg11[%152, %c0_49, %c0_50] : memref<8x2x128xf32, #tpu.memory_space<vmem>>, vector<1x2x128xf32>
    %154 = vector.shape_cast %153 : vector<1x2x128xf32> to vector<2x128xf32>
    %cst_51 = arith.constant dense<0.000000e+00> : vector<2x128xf32>
    %155 = tpu.matmul %147, %13, %cst_51 {dimension_numbers = #tpu.dot_dimension_numbers<[1], [0], [0], [1], [0, 0, 1, 1], [], []>} : vector<2x32xf32>, vector<32x128xf32>, vector<2x128xf32> -> vector<2x128xf32>
    %156 = arith.addf %154, %155 : vector<2x128xf32>
    %157 = vector.extract_strided_slice %156 {offsets = [0, 0], sizes = [2, 32], strides = [1, 1]} : vector<2x128xf32> to vector<2x32xf32>
    %158 = arith.negf %157 : vector<2x32xf32>
    %159 = math.exp %158 : vector<2x32xf32>
    %cst_52 = arith.constant 1.000000e+00 : f32
    %160 = vector.broadcast %cst_52 : f32 to vector<2x32xf32>
    %161 = arith.addf %160, %159 : vector<2x32xf32>
    %162 = arith.divf %160, %161 : vector<2x32xf32>
    %163 = vector.extract_strided_slice %156 {offsets = [0, 32], sizes = [2, 32], strides = [1, 1]} : vector<2x128xf32> to vector<2x32xf32>
    %164 = arith.negf %163 : vector<2x32xf32>
    %165 = math.exp %164 : vector<2x32xf32>
    %cst_53 = arith.constant 1.000000e+00 : f32
    %166 = vector.broadcast %cst_53 : f32 to vector<2x32xf32>
    %167 = arith.addf %166, %165 : vector<2x32xf32>
    %168 = arith.divf %166, %167 : vector<2x32xf32>
    %169 = vector.extract_strided_slice %156 {offsets = [0, 64], sizes = [2, 32], strides = [1, 1]} : vector<2x128xf32> to vector<2x32xf32>
    %170 = math.tanh %169 : vector<2x32xf32>
    %171 = vector.extract_strided_slice %156 {offsets = [0, 96], sizes = [2, 32], strides = [1, 1]} : vector<2x128xf32> to vector<2x32xf32>
    %172 = arith.negf %171 : vector<2x32xf32>
    %173 = math.exp %172 : vector<2x32xf32>
    %cst_54 = arith.constant 1.000000e+00 : f32
    %174 = vector.broadcast %cst_54 : f32 to vector<2x32xf32>
    %175 = arith.addf %174, %173 : vector<2x32xf32>
    %176 = arith.divf %174, %175 : vector<2x32xf32>
    %177 = arith.mulf %168, %145 : vector<2x32xf32>
    %178 = arith.mulf %162, %170 : vector<2x32xf32>
    %179 = arith.addf %177, %178 : vector<2x32xf32>
    %180 = math.tanh %179 : vector<2x32xf32>
    %181 = arith.mulf %176, %180 : vector<2x32xf32>
    %182 = arith.index_cast %c4_i32 : i32 to index
    %c0_55 = arith.constant 0 : index
    %c0_56 = arith.constant 0 : index
    %183 = vector.load %arg12[%182, %c0_55, %c0_56] : memref<8x2x32xf32, #tpu.memory_space<vmem>>, vector<1x2x32xf32>
    %184 = vector.shape_cast %183 : vector<1x2x32xf32> to vector<2x32xf32>
    %185 = vector.shape_cast %181 : vector<2x32xf32> to vector<1x2x32xf32>
    tpu.vector_store %arg12[%182, %c0_55, %c0_56], %185 {strides = array<i32>} : memref<8x2x32xf32, #tpu.memory_space<vmem>>, vector<1x2x32xf32>,
    %c5_i32 = arith.constant 5 : i32
    %186 = arith.index_cast %c5_i32 : i32 to index
    %c0_57 = arith.constant 0 : index
    %c0_58 = arith.constant 0 : index
    %187 = vector.load %arg11[%186, %c0_57, %c0_58] : memref<8x2x128xf32, #tpu.memory_space<vmem>>, vector<1x2x128xf32>
    %188 = vector.shape_cast %187 : vector<1x2x128xf32> to vector<2x128xf32>
    %cst_59 = arith.constant dense<0.000000e+00> : vector<2x128xf32>
    %189 = tpu.matmul %181, %13, %cst_59 {dimension_numbers = #tpu.dot_dimension_numbers<[1], [0], [0], [1], [0, 0, 1, 1], [], []>} : vector<2x32xf32>, vector<32x128xf32>, vector<2x128xf32> -> vector<2x128xf32>
    %190 = arith.addf %188, %189 : vector<2x128xf32>
    %191 = vector.extract_strided_slice %190 {offsets = [0, 0], sizes = [2, 32], strides = [1, 1]} : vector<2x128xf32> to vector<2x32xf32>
    %192 = arith.negf %191 : vector<2x32xf32>
    %193 = math.exp %192 : vector<2x32xf32>
    %cst_60 = arith.constant 1.000000e+00 : f32
    %194 = vector.broadcast %cst_60 : f32 to vector<2x32xf32>
    %195 = arith.addf %194, %193 : vector<2x32xf32>
    %196 = arith.divf %194, %195 : vector<2x32xf32>
    %197 = vector.extract_strided_slice %190 {offsets = [0, 32], sizes = [2, 32], strides = [1, 1]} : vector<2x128xf32> to vector<2x32xf32>
    %198 = arith.negf %197 : vector<2x32xf32>
    %199 = math.exp %198 : vector<2x32xf32>
    %cst_61 = arith.constant 1.000000e+00 : f32
    %200 = vector.broadcast %cst_61 : f32 to vector<2x32xf32>
    %201 = arith.addf %200, %199 : vector<2x32xf32>
    %202 = arith.divf %200, %201 : vector<2x32xf32>
    %203 = vector.extract_strided_slice %190 {offsets = [0, 64], sizes = [2, 32], strides = [1, 1]} : vector<2x128xf32> to vector<2x32xf32>
    %204 = math.tanh %203 : vector<2x32xf32>
    %205 = vector.extract_strided_slice %190 {offsets = [0, 96], sizes = [2, 32], strides = [1, 1]} : vector<2x128xf32> to vector<2x32xf32>
    %206 = arith.negf %205 : vector<2x32xf32>
    %207 = math.exp %206 : vector<2x32xf32>
    %cst_62 = arith.constant 1.000000e+00 : f32
    %208 = vector.broadcast %cst_62 : f32 to vector<2x32xf32>
    %209 = arith.addf %208, %207 : vector<2x32xf32>
    %210 = arith.divf %208, %209 : vector<2x32xf32>
    %211 = arith.mulf %202, %179 : vector<2x32xf32>
    %212 = arith.mulf %196, %204 : vector<2x32xf32>
    %213 = arith.addf %211, %212 : vector<2x32xf32>
    %214 = math.tanh %213 : vector<2x32xf32>
    %215 = arith.mulf %210, %214 : vector<2x32xf32>
    %216 = arith.index_cast %c5_i32 : i32 to index
    %c0_63 = arith.constant 0 : index
    %c0_64 = arith.constant 0 : index
    %217 = vector.load %arg12[%216, %c0_63, %c0_64] : memref<8x2x32xf32, #tpu.memory_space<vmem>>, vector<1x2x32xf32>
    %218 = vector.shape_cast %217 : vector<1x2x32xf32> to vector<2x32xf32>
    %219 = vector.shape_cast %215 : vector<2x32xf32> to vector<1x2x32xf32>
    tpu.vector_store %arg12[%216, %c0_63, %c0_64], %219 {strides = array<i32>} : memref<8x2x32xf32, #tpu.memory_space<vmem>>, vector<1x2x32xf32>,
    %c6_i32 = arith.constant 6 : i32
    %220 = arith.index_cast %c6_i32 : i32 to index
    %c0_65 = arith.constant 0 : index
    %c0_66 = arith.constant 0 : index
    %221 = vector.load %arg11[%220, %c0_65, %c0_66] : memref<8x2x128xf32, #tpu.memory_space<vmem>>, vector<1x2x128xf32>
    %222 = vector.shape_cast %221 : vector<1x2x128xf32> to vector<2x128xf32>
    %cst_67 = arith.constant dense<0.000000e+00> : vector<2x128xf32>
    %223 = tpu.matmul %215, %13, %cst_67 {dimension_numbers = #tpu.dot_dimension_numbers<[1], [0], [0], [1], [0, 0, 1, 1], [], []>} : vector<2x32xf32>, vector<32x128xf32>, vector<2x128xf32> -> vector<2x128xf32>
    %224 = arith.addf %222, %223 : vector<2x128xf32>
    %225 = vector.extract_strided_slice %224 {offsets = [0, 0], sizes = [2, 32], strides = [1, 1]} : vector<2x128xf32> to vector<2x32xf32>
    %226 = arith.negf %225 : vector<2x32xf32>
    %227 = math.exp %226 : vector<2x32xf32>
    %cst_68 = arith.constant 1.000000e+00 : f32
    %228 = vector.broadcast %cst_68 : f32 to vector<2x32xf32>
    %229 = arith.addf %228, %227 : vector<2x32xf32>
    %230 = arith.divf %228, %229 : vector<2x32xf32>
    %231 = vector.extract_strided_slice %224 {offsets = [0, 32], sizes = [2, 32], strides = [1, 1]} : vector<2x128xf32> to vector<2x32xf32>
    %232 = arith.negf %231 : vector<2x32xf32>
    %233 = math.exp %232 : vector<2x32xf32>
    %cst_69 = arith.constant 1.000000e+00 : f32
    %234 = vector.broadcast %cst_69 : f32 to vector<2x32xf32>
    %235 = arith.addf %234, %233 : vector<2x32xf32>
    %236 = arith.divf %234, %235 : vector<2x32xf32>
    %237 = vector.extract_strided_slice %224 {offsets = [0, 64], sizes = [2, 32], strides = [1, 1]} : vector<2x128xf32> to vector<2x32xf32>
    %238 = math.tanh %237 : vector<2x32xf32>
    %239 = vector.extract_strided_slice %224 {offsets = [0, 96], sizes = [2, 32], strides = [1, 1]} : vector<2x128xf32> to vector<2x32xf32>
    %240 = arith.negf %239 : vector<2x32xf32>
    %241 = math.exp %240 : vector<2x32xf32>
    %cst_70 = arith.constant 1.000000e+00 : f32
    %242 = vector.broadcast %cst_70 : f32 to vector<2x32xf32>
    %243 = arith.addf %242, %241 : vector<2x32xf32>
    %244 = arith.divf %242, %243 : vector<2x32xf32>
    %245 = arith.mulf %236, %213 : vector<2x32xf32>
    %246 = arith.mulf %230, %238 : vector<2x32xf32>
    %247 = arith.addf %245, %246 : vector<2x32xf32>
    %248 = math.tanh %247 : vector<2x32xf32>
    %249 = arith.mulf %244, %248 : vector<2x32xf32>
    %250 = arith.index_cast %c6_i32 : i32 to index
    %c0_71 = arith.constant 0 : index
    %c0_72 = arith.constant 0 : index
    %251 = vector.load %arg12[%250, %c0_71, %c0_72] : memref<8x2x32xf32, #tpu.memory_space<vmem>>, vector<1x2x32xf32>
    %252 = vector.shape_cast %251 : vector<1x2x32xf32> to vector<2x32xf32>
    %253 = vector.shape_cast %249 : vector<2x32xf32> to vector<1x2x32xf32>
    tpu.vector_store %arg12[%250, %c0_71, %c0_72], %253 {strides = array<i32>} : memref<8x2x32xf32, #tpu.memory_space<vmem>>, vector<1x2x32xf32>,
    %c7_i32 = arith.constant 7 : i32
    %254 = arith.index_cast %c7_i32 : i32 to index
    %c0_73 = arith.constant 0 : index
    %c0_74 = arith.constant 0 : index
    %255 = vector.load %arg11[%254, %c0_73, %c0_74] : memref<8x2x128xf32, #tpu.memory_space<vmem>>, vector<1x2x128xf32>
    %256 = vector.shape_cast %255 : vector<1x2x128xf32> to vector<2x128xf32>
    %cst_75 = arith.constant dense<0.000000e+00> : vector<2x128xf32>
    %257 = tpu.matmul %249, %13, %cst_75 {dimension_numbers = #tpu.dot_dimension_numbers<[1], [0], [0], [1], [0, 0, 1, 1], [], []>} : vector<2x32xf32>, vector<32x128xf32>, vector<2x128xf32> -> vector<2x128xf32>
    %258 = arith.addf %256, %257 : vector<2x128xf32>
    %259 = vector.extract_strided_slice %258 {offsets = [0, 0], sizes = [2, 32], strides = [1, 1]} : vector<2x128xf32> to vector<2x32xf32>
    %260 = arith.negf %259 : vector<2x32xf32>
    %261 = math.exp %260 : vector<2x32xf32>
    %cst_76 = arith.constant 1.000000e+00 : f32
    %262 = vector.broadcast %cst_76 : f32 to vector<2x32xf32>
    %263 = arith.addf %262, %261 : vector<2x32xf32>
    %264 = arith.divf %262, %263 : vector<2x32xf32>
    %265 = vector.extract_strided_slice %258 {offsets = [0, 32], sizes = [2, 32], strides = [1, 1]} : vector<2x128xf32> to vector<2x32xf32>
    %266 = arith.negf %265 : vector<2x32xf32>
    %267 = math.exp %266 : vector<2x32xf32>
    %cst_77 = arith.constant 1.000000e+00 : f32
    %268 = vector.broadcast %cst_77 : f32 to vector<2x32xf32>
    %269 = arith.addf %268, %267 : vector<2x32xf32>
    %270 = arith.divf %268, %269 : vector<2x32xf32>
    %271 = vector.extract_strided_slice %258 {offsets = [0, 64], sizes = [2, 32], strides = [1, 1]} : vector<2x128xf32> to vector<2x32xf32>
    %272 = math.tanh %271 : vector<2x32xf32>
    %273 = vector.extract_strided_slice %258 {offsets = [0, 96], sizes = [2, 32], strides = [1, 1]} : vector<2x128xf32> to vector<2x32xf32>
    %274 = arith.negf %273 : vector<2x32xf32>
    %275 = math.exp %274 : vector<2x32xf32>
    %cst_78 = arith.constant 1.000000e+00 : f32
    %276 = vector.broadcast %cst_78 : f32 to vector<2x32xf32>
    %277 = arith.addf %276, %275 : vector<2x32xf32>
    %278 = arith.divf %276, %277 : vector<2x32xf32>
    %279 = arith.mulf %270, %247 : vector<2x32xf32>
    %280 = arith.mulf %264, %272 : vector<2x32xf32>
    %281 = arith.addf %279, %280 : vector<2x32xf32>
    %282 = math.tanh %281 : vector<2x32xf32>
    %283 = arith.mulf %278, %282 : vector<2x32xf32>
    %284 = arith.index_cast %c7_i32 : i32 to index
    %c0_79 = arith.constant 0 : index
    %c0_80 = arith.constant 0 : index
    %285 = vector.load %arg12[%284, %c0_79, %c0_80] : memref<8x2x32xf32, #tpu.memory_space<vmem>>, vector<1x2x32xf32>
    %286 = vector.shape_cast %285 : vector<1x2x32xf32> to vector<2x32xf32>
    %287 = vector.shape_cast %283 : vector<2x32xf32> to vector<1x2x32xf32>
    tpu.vector_store %arg12[%284, %c0_79, %c0_80], %287 {strides = array<i32>} : memref<8x2x32xf32, #tpu.memory_space<vmem>>, vector<1x2x32xf32>,
    %c8_i32 = arith.constant 8 : i32
    %c0_81 = arith.constant 0 : index
    %c0_82 = arith.constant 0 : index
    %288 = vector.load %arg13[%c0_81, %c0_82] : memref<2x32xf32, #tpu.memory_space<vmem>>, vector<2x32xf32>
    tpu.vector_store %arg13[%c0_81, %c0_82], %283 {strides = array<i32>} : memref<2x32xf32, #tpu.memory_space<vmem>>, vector<2x32xf32>,
    %c0_83 = arith.constant 0 : index
    %c0_84 = arith.constant 0 : index
    %289 = vector.load %arg14[%c0_83, %c0_84] : memref<2x32xf32, #tpu.memory_space<vmem>>, vector<2x32xf32>
    tpu.vector_store %arg14[%c0_83, %c0_84], %281 {strides = array<i32>} : memref<2x32xf32, #tpu.memory_space<vmem>>, vector<2x32xf32>,
    %c0_85 = arith.constant 0 : index
    %c0_86 = arith.constant 0 : index
    %c0_87 = arith.constant 0 : index
    %290 = vector.load %arg12[%c0_85, %c0_86, %c0_87] : memref<8x2x32xf32, #tpu.memory_space<vmem>>, vector<8x2x32xf32>
    %291 = tpu.transpose %290, [1, 0, 2] : vector<8x2x32xf32> -> vector<2x8x32xf32>
    %c0_88 = arith.constant 0 : index
    %c0_89 = arith.constant 0 : index
    %c0_90 = arith.constant 0 : index
    %292 = vector.load %arg8[%c0_88, %c0_89, %c0_90] : memref<2x8x32xf32, #tpu.memory_space<vmem>>, vector<2x8x32xf32>
    tpu.vector_store %arg8[%c0_88, %c0_89, %c0_90], %291 {strides = array<i32>} : memref<2x8x32xf32, #tpu.memory_space<vmem>>, vector<2x8x32xf32>,
    %c0_i32_91 = arith.constant 0 : i32
    %293 = arith.cmpi eq, %arg1, %c0_i32_91 : i32
    %294 = arith.extui %293 : i1 to i32
    %c0_i32_92 = arith.constant 0 : i32
    %295 = arith.cmpi ne, %294, %c0_i32_92 : i32
    scf.if %295 {
      %c0_93 = arith.constant 0 : index
      %c0_94 = arith.constant 0 : index
      %296 = vector.load %arg9[%c0_93, %c0_94] : memref<2x32xf32, #tpu.memory_space<vmem>>, vector<2x32xf32>
      tpu.vector_store %arg9[%c0_93, %c0_94], %283 {strides = array<i32>} : memref<2x32xf32, #tpu.memory_space<vmem>>, vector<2x32xf32>,
      %c0_95 = arith.constant 0 : index
      %c0_96 = arith.constant 0 : index
      %297 = vector.load %arg10[%c0_95, %c0_96] : memref<2x32xf32, #tpu.memory_space<vmem>>, vector<2x32xf32>
      tpu.vector_store %arg10[%c0_95, %c0_96], %281 {strides = array<i32>} : memref<2x32xf32, #tpu.memory_space<vmem>>, vector<2x32xf32>,
    } else {
    }
    return
  }
  func.func @transform_0(%arg0: i32, %arg1: i32) -> (i32, i32, i32) {
    %c0_i32 = arith.constant 0 : i32
    %c0_i32_0 = arith.constant 0 : i32
    return %arg0, %arg1, %c0_i32 : i32, i32, i32
  }
  func.func @transform_1(%arg0: i32, %arg1: i32) -> (i32, i32) {
    %c0_i32 = arith.constant 0 : i32
    %c0_i32_0 = arith.constant 0 : i32
    return %arg0, %c0_i32 : i32, i32
  }
  func.func @transform_2(%arg0: i32, %arg1: i32) -> (i32, i32) {
    %c0_i32 = arith.constant 0 : i32
    %c0_i32_0 = arith.constant 0 : i32
    return %arg0, %c0_i32 : i32, i32
  }
  func.func @transform_3(%arg0: i32, %arg1: i32) -> (i32, i32) {
    %c0_i32 = arith.constant 0 : i32
    %c0_i32_0 = arith.constant 0 : i32
    %c0_i32_1 = arith.constant 0 : i32
    return %c0_i32, %c0_i32_0 : i32, i32
  }
  func.func @transform_4(%arg0: i32, %arg1: i32) -> (i32, i32) {
    %c0_i32 = arith.constant 0 : i32
    %c0_i32_0 = arith.constant 0 : i32
    %c0_i32_1 = arith.constant 0 : i32
    return %c0_i32, %c0_i32_0 : i32, i32
  }
  func.func @transform_5(%arg0: i32, %arg1: i32) -> (i32, i32) {
    %c0_i32 = arith.constant 0 : i32
    %c0_i32_0 = arith.constant 0 : i32
    %c0_i32_1 = arith.constant 0 : i32
    return %c0_i32, %c0_i32_0 : i32, i32
  }
  func.func @transform_6(%arg0: i32, %arg1: i32) -> (i32, i32, i32) {
    %c0_i32 = arith.constant 0 : i32
    %c0_i32_0 = arith.constant 0 : i32
    return %arg0, %arg1, %c0_i32 : i32, i32, i32
  }
  func.func @transform_7(%arg0: i32, %arg1: i32) -> (i32, i32) {
    %c0_i32 = arith.constant 0 : i32
    %c0_i32_0 = arith.constant 0 : i32
    return %arg0, %c0_i32 : i32, i32
  }
  func.func @transform_8(%arg0: i32, %arg1: i32) -> (i32, i32) {
    %c0_i32 = arith.constant 0 : i32
    %c0_i32_0 = arith.constant 0 : i32
    return %arg0, %c0_i32 : i32, i32
  }
}

</mosaic_0001>

<llo_original>
// kernel: tpu_custom_call.1
$region0: #{tpu_custom_call.1}
  #allocation0 [shape = 'u32[]', space=smem, size = 0x4, offset = 0x4, fixed_abs, tag = 'smem constant byte address 0x4 - core index']
  #allocation1 [shape = 'u32[144,128]{1,0:T(1,128)}', space=vmem, size = 0x12000, scoped, tag = 'internal scratch']
  #allocation2 [shape = 'f32[8,2,128]{2,1,0:T(2,128)}', space=vmem, size = 0x2000, scoped, tag = 'scratch operand']
  #allocation3 [shape = 'f32[8,2,32]{2,1,0:T(2,128)}', space=vmem, size = 0x2000, scoped, tag = 'scratch operand']
  #allocation4 [shape = 'f32[2,32]{1,0:T(2,128)}', space=vmem, size = 0x400, scoped, tag = 'scratch operand']
  #allocation5 [shape = 'f32[2,32]{1,0:T(2,128)}', space=vmem, size = 0x400, scoped, tag = 'scratch operand']
  %s0 = inlined_call_operand.hbm [shape: f32[2,8,32], index: 0, kind: input, shape index: {}]
  %s1 = inlined_call_operand.vmem [shape: f32[2,32], index: 1, kind: input, shape index: {}]
  %s2 = inlined_call_operand.vmem [shape: f32[2,32], index: 2, kind: input, shape index: {}]
  %s3 = inlined_call_operand.hbm [shape: f32[32,128], index: 3, kind: input, shape index: {}]
  %s4 = inlined_call_operand.hbm [shape: f32[32,128], index: 4, kind: input, shape index: {}]
  %s5 = inlined_call_operand.vmem [shape: f32[1,128], index: 5, kind: input, shape index: {}]
  %s6 = inlined_call_operand.hbm [shape: f32[2,8,32], index: 6, kind: output, shape index: {0}]
  %s7 = inlined_call_operand.hbm [shape: f32[2,32], index: 7, kind: output, shape index: {1}]
  %s8 = inlined_call_operand.hbm [shape: f32[2,32], index: 8, kind: output, shape index: {2}]
  %9 = xla_tuple %s6, %s7, %s8
  %s10 = sld [smem:[#allocation0]]
  $region70: #{tpu_custom_call.1} parent=0
    _
  %s12 = ssub.s32 1, %s10
  %s13 = scalar_select 0, %s12, %s10
  $region1: #{tpu_custom_call.1} parent=0
    #allocation6 [shape = 'u8[8192]{0}', space=vmem, size = 0x2000, scoped, tag = 'input window, operand 0, single buffered']
    #allocation7 [shape = 's32[1]{0}', space=sflag, size = 0x4, scoped, tag = 'scoped memory for tpu_custom_call.1']
    #allocation8 [shape = 's32[1]{0}', space=sflag, size = 0x4, scoped, tag = 'scoped memory for tpu_custom_call.1']
    #allocation9 [shape = 'u8[16384]{0}', space=vmem, size = 0x4000, scoped, tag = 'input window, operand 3, single buffered']
    #allocation10 [shape = 's32[1]{0}', space=sflag, size = 0x4, scoped, tag = 'scoped memory for tpu_custom_call.1']
    #allocation11 [shape = 'u8[16384]{0}', space=vmem, size = 0x4000, scoped, tag = 'input window, operand 4, single buffered']
    #allocation12 [shape = 'u8[8192]{0}', space=vmem, size = 0x2000, scoped, tag = 'output window, operand 0, single buffered']
    #allocation13 [shape = 'u8[1024]{0}', space=vmem, size = 0x400, scoped, tag = 'output window, operand 1, single buffered']
    #allocation14 [shape = 's32[1]{0}', space=sflag, size = 0x4, scoped, tag = 'scoped memory for tpu_custom_call.1']
    #allocation15 [shape = 'u8[1024]{0}', space=vmem, size = 0x400, scoped, tag = 'output window, operand 2, single buffered']
    %14 = vsyncpa [#allocation7], 0
    %15 = vsyncpa [#allocation10], 0
    %16 = vsyncpa [#allocation8], 0
    %17 = vsyncpa [#allocation14], 0
    // Predicated region
    $region2: #{tpu_custom_call.1} parent=1 // pred_check
      _
    $region3: #{tpu_custom_call.1} parent=1 // pred_check_branch
      %19 = sbr.rel (0) target = $region5
    $region4: #{tpu_custom_call.1} parent=1 // pred_region
      %s21 = ssub.s32 256, 256
      %22 = vsyncadd [#allocation7], %s21
      %s23 = sshll.u32 [#allocation6], 4
      %s24 = int_to_ptr.vmem [resolvable:$true] %s23
      %29 = dma.hbm_to_vmem [thread:$0]  %s0, 256, %s24, [#allocation7], 128, 128, 8
    $region5: #{tpu_custom_call.1} parent=1 // pred_fallthru
      _
    // Predicated region
    $region6: #{tpu_custom_call.1} parent=1 // pred_check
      _
    $region7: #{tpu_custom_call.1} parent=1 // pred_check_branch
      %31 = sbr.rel (0) target = $region9
    $region8: #{tpu_custom_call.1} parent=1 // pred_region
      _
    $region9: #{tpu_custom_call.1} parent=1 // pred_fallthru
      _
    // Predicated region
    $region10: #{tpu_custom_call.1} parent=1 // pred_check
      _
    $region11: #{tpu_custom_call.1} parent=1 // pred_check_branch
      %33 = sbr.rel (0) target = $region13
    $region12: #{tpu_custom_call.1} parent=1 // pred_region
      _
    $region13: #{tpu_custom_call.1} parent=1 // pred_fallthru
      _
    // Predicated region
    $region14: #{tpu_custom_call.1} parent=1 // pred_check
      _
    $region15: #{tpu_custom_call.1} parent=1 // pred_check_branch
      %35 = sbr.rel (0) target = $region17
    $region16: #{tpu_custom_call.1} parent=1 // pred_region
      %s37 = ssub.s32 512, 512
      %38 = vsyncadd [#allocation10], %s37
      %s39 = sshll.u32 [#allocation9], 4
      %s40 = int_to_ptr.vmem [resolvable:$true] %s39
      %45 = dma.hbm_to_vmem [thread:$0]  %s3, 512, %s40, [#allocation10], 128, 128, 8
    $region17: #{tpu_custom_call.1} parent=1 // pred_fallthru
      _
    // Predicated region
    $region18: #{tpu_custom_call.1} parent=1 // pred_check
      _
    $region19: #{tpu_custom_call.1} parent=1 // pred_check_branch
      %47 = sbr.rel (0) target = $region21
    $region20: #{tpu_custom_call.1} parent=1 // pred_region
      %s49 = ssub.s32 512, 512
      %50 = vsyncadd [#allocation10], %s49
      %s51 = sshll.u32 [#allocation11], 4
      %s52 = int_to_ptr.vmem [resolvable:$true] %s51
      %57 = dma.hbm_to_vmem [thread:$0]  %s4, 512, %s52, [#allocation10], 128, 128, 8
    $region21: #{tpu_custom_call.1} parent=1 // pred_fallthru
      _
    // Predicated region
    $region22: #{tpu_custom_call.1} parent=1 // pred_check
      _
    $region23: #{tpu_custom_call.1} parent=1 // pred_check_branch
      %59 = sbr.rel (0) target = $region25
    $region24: #{tpu_custom_call.1} parent=1 // pred_region
      _
    $region25: #{tpu_custom_call.1} parent=1 // pred_fallthru
      _
    // Predicated region
    $region26: #{tpu_custom_call.1} parent=1 // pred_check
      _
    $region27: #{tpu_custom_call.1} parent=1 // pred_check_branch
      %61 = sbr.rel (0) target = $region29
    $region28: #{tpu_custom_call.1} parent=1 // pred_region
      %62 = dma.done [#allocation7], 256
    $region29: #{tpu_custom_call.1} parent=1 // pred_fallthru
      _
    // Predicated region
    $region30: #{tpu_custom_call.1} parent=1 // pred_check
      _
    $region31: #{tpu_custom_call.1} parent=1 // pred_check_branch
      %64 = sbr.rel (0) target = $region33
    $region32: #{tpu_custom_call.1} parent=1 // pred_region
      %65 = dma.done [#allocation10], 512
    $region33: #{tpu_custom_call.1} parent=1 // pred_fallthru
      _
    // Predicated region
    $region34: #{tpu_custom_call.1} parent=1 // pred_check
      _
    $region35: #{tpu_custom_call.1} parent=1 // pred_check_branch
      %67 = sbr.rel (0) target = $region37
    $region36: #{tpu_custom_call.1} parent=1 // pred_region
      %68 = dma.done [#allocation10], 512
    $region37: #{tpu_custom_call.1} parent=1 // pred_fallthru
      _
    %p69 = scmp.eq.s32.totalorder 0, 0
    // Predicated region
    $region38: #{tpu_custom_call.1} parent=1 // pred_check
      %p70 = pneg %p69
    $region39: #{tpu_custom_call.1} parent=1 // pred_check_branch
      %72 = sbr.rel (%p70) target = $region41
    $region40: #{tpu_custom_call.1} parent=1 // pred_region
      %v73 = vld [vmem:[%s1] sm:$0x3]
      %vm74 = vcmask 254976
      %75 = vst.msk [vmem:[#allocation4] sm:$0x3] %vm74, %v73
      %v76 = vld [vmem:[%s2] sm:$0x3]
      %77 = vst.msk [vmem:[#allocation5] sm:$0x3] %vm74, %v76
    $region41: #{tpu_custom_call.1} parent=1 // pred_fallthru
      _
    %v78 = vld [vmem:[#allocation6] sm:$0xff]
    %v79 = vld [vmem:[#allocation6 + $0x8] sm:$0xff]
    %v80 = vcombine.high %v78, 0.0
    %v82 = vunpack.c.l.s4 1983009808
    %v83 = vunpack.c.0.s8 %v82
    %v84 = vlaneseq
    %v85 = vshrl.u32 %v84, 7
    %v86 = vsub.s32 %v83, %v85
    %v87 = vrot.slane %v78, %v86
    %v89 = vunpack.c.l.s4 1983009808
    %v90 = vunpack.c.0.s8 %v89
    %v91 = vlaneseq
    %v92 = vshrl.u32 %v91, 7
    %v93 = vsub.s32 %v90, %v92
    %v94 = vrot.slane %v80, %v93
    %v95 = vcombine.high %v79, 0.0
    %v97 = vunpack.c.l.s4 1983009808
    %v98 = vunpack.c.0.s8 %v97
    %v99 = vlaneseq
    %v100 = vshrl.u32 %v99, 7
    %v101 = vsub.s32 %v98, %v100
    %v102 = vrot.slane %v79, %v101
    %v104 = vunpack.c.l.s4 1983009808
    %v105 = vunpack.c.0.s8 %v104
    %v106 = vlaneseq
    %v107 = vshrl.u32 %v106, 7
    %v108 = vsub.s32 %v105, %v107
    %v109 = vrot.slane %v95, %v108
    %v110 = vcombine.low %v87, %v102
    %v111 = vcombine.high %v87, %v102
    %v113 = vunpack.c.l.s4 1934713408
    %v114 = vunpack.c.0.s8 %v113
    %v115 = vlaneseq
    %v116 = vshrl.u32 %v115, 7
    %v117 = vsub.s32 %v114, %v116
    %v118 = vrot.slane %v110, %v117
    %v120 = vunpack.c.l.s4 1934713408
    %v121 = vunpack.c.0.s8 %v120
    %v122 = vlaneseq
    %v123 = vshrl.u32 %v122, 7
    %v124 = vsub.s32 %v121, %v123
    %v125 = vrot.slane %v111, %v124
    %v126 = vcombine.low %v94, %v109
    %v127 = vcombine.high %v94, %v109
    %v129 = vunpack.c.l.s4 1934713408
    %v130 = vunpack.c.0.s8 %v129
    %v131 = vlaneseq
    %v132 = vshrl.u32 %v131, 7
    %v133 = vsub.s32 %v130, %v132
    %v134 = vrot.slane %v126, %v133
    %v136 = vunpack.c.l.s4 1934713408
    %v137 = vunpack.c.0.s8 %v136
    %v138 = vlaneseq
    %v139 = vshrl.u32 %v138, 7
    %v140 = vsub.s32 %v137, %v139
    %v141 = vrot.slane %v127, %v140
    %v142 = vcombine.high %v118, 0.0
    %v143 = vcombine.high %v125, 0.0
    %v144 = vcombine.high %v134, 0.0
    %v145 = vcombine.high %v141, 0.0
    %v146 = vld [vmem:[#allocation9] sm:$0xff]
    %v147 = vld [vmem:[#allocation9 + $0x8] sm:$0xff]
    %v148 = vld [vmem:[#allocation9 + $0x10] sm:$0xff]
    %v149 = vld [vmem:[#allocation9 + $0x18] sm:$0xff]
    %v150 = vld [vmem:[%s5] sm:$0x1]
    %v152 = vlaneseq
    %v153 = vshrl.u32 %v152, 7
    %v154 = vsub.s32 0, %v153
    %v155 = vrot.slane %v150, %v154
    %v165 = vcombine.low %v118, %v142
    %v166 = vcombine.low %v125, %v143
    %v168 = vunpack.c.l.s4 1983009808
    %v169 = vunpack.c.0.s8 %v168
    %v170 = vlaneseq
    %v171 = vshrl.u32 %v170, 7
    %v172 = vsub.s32 %v169, %v171
    %v173 = vrot.slane %v165, %v172
    %v175 = vunpack.c.l.s4 1983009808
    %v176 = vunpack.c.0.s8 %v175
    %v177 = vlaneseq
    %v178 = vshrl.u32 %v177, 7
    %v179 = vsub.s32 %v176, %v178
    %v180 = vrot.slane %v166, %v179
    %v181 = vcombine.low %v173, %v180
    %v182 = vcombine.low %v134, %v144
    %v183 = vcombine.low %v141, %v145
    %v185 = vunpack.c.l.s4 1983009808
    %v186 = vunpack.c.0.s8 %v185
    %v187 = vlaneseq
    %v188 = vshrl.u32 %v187, 7
    %v189 = vsub.s32 %v186, %v188
    %v190 = vrot.slane %v182, %v189
    %v192 = vunpack.c.l.s4 1983009808
    %v193 = vunpack.c.0.s8 %v192
    %v194 = vlaneseq
    %v195 = vshrl.u32 %v194, 7
    %v196 = vsub.s32 %v193, %v195
    %v197 = vrot.slane %v183, %v196
    %v198 = vcombine.low %v190, %v197
    %vm199 = vcmask 261120
    %v200 = vsel %vm199, %v181, 0
    %v202 = vsel %vm199, %v198, 0
    %204 = vmatprep.subr.mxu0 0.0
    %205 = vmatpush1.msra.mxu0 %v146
    %206 = vmatprep.subr.mxu0 0.0
    %207 = vmatpush1.msra.mxu0 %v147
    %208 = vmatprep.subr.mxu0 0.0
    %209 = vmatpush1.msra.mxu0 %v148
    %210 = vmatprep.subr.mxu0 0.0
    %211 = vmatpush1.msra.mxu0 %v149
    %212 = vmatprep.subr.mxu0 0.0
    %213 = vmatpush1.msra.mxu0 0.0
    %214 = vmatprep.subr.mxu0 0.0
    %215 = vmatpush1.msra.mxu0 0.0
    %216 = vmatprep.subr.mxu0 0.0
    %217 = vmatpush1.msra.mxu0 0.0
    %218 = vmatprep.subr.mxu0 0.0
    %219 = vmatpush1.msra.mxu0 0.0
    %220 = vmatprep.subr.mxu0 0.0
    %221 = vmatpush1.msra.mxu0 0.0
    %222 = vmatprep.subr.mxu0 0.0
    %223 = vmatpush1.msra.mxu0 0.0
    %224 = vmatprep.subr.mxu0 0.0
    %225 = vmatpush1.msra.mxu0 0.0
    %226 = vmatprep.subr.mxu0 0.0
    %227 = vmatpush1.msra.mxu0 0.0
    %228 = vmatprep.subr.mxu0 0.0
    %229 = vmatpush1.msra.mxu0 0.0
    %230 = vmatprep.subr.mxu0 0.0
    %231 = vmatpush1.msra.mxu0 0.0
    %232 = vmatprep.subr.mxu0 0.0
    %233 = vmatpush1.msra.mxu0 0.0
    %234 = vmatprep.subr.mxu0 0.0
    %235 = vmatpush1.msra.mxu0 0.0
    %236 = vmatprep.subr.mxu0 0.0
    %237 = vmatpush1.msra.mxu0 0.0
    %238 = vmatprep.subr.mxu0 0.0
    %239 = vmatpush1.msra.mxu0 0.0
    %240 = vmatprep.subr.mxu0 0.0
    %241 = vmatpush1.msra.mxu0 0.0
    %242 = vmatprep.subr.mxu0 0.0
    %243 = vmatpush1.msra.mxu0 0.0
    %244 = vmatprep.subr.mxu0 0.0
    %245 = vmatpush1.msra.mxu0 0.0
    %246 = vmatprep.subr.mxu0 0.0
    %247 = vmatpush1.msra.mxu0 0.0
    %248 = vmatprep.subr.mxu0 0.0
    %249 = vmatpush1.msra.mxu0 0.0
    %250 = vmatprep.subr.mxu0 0.0
    %251 = vmatpush1.msra.mxu0 0.0
    %252 = vmatprep.subr.mxu0 0.0
    %253 = vmatpush1.msra.mxu0 0.0
    %254 = vmatprep.subr.mxu0 0.0
    %255 = vmatpush1.msra.mxu0 0.0
    %256 = vmatprep.subr.mxu0 0.0
    %257 = vmatpush1.msra.mxu0 0.0
    %258 = vmatprep.subr.mxu0 0.0
    %259 = vmatpush1.msra.mxu0 0.0
    %260 = vmatprep.subr.mxu0 0.0
    %261 = vmatpush1.msra.mxu0 0.0
    %262 = vmatprep.subr.mxu0 0.0
    %263 = vmatpush1.msra.mxu0 0.0
    %264 = vmatprep.subr.mxu0 0.0
    %265 = vmatpush1.msra.mxu0 0.0
    %266 = vmatprep.subr.mxu0 0.0
    %267 = vmatpush1.msra.mxu0 0.0
    %268 = vmatprep.mubr.f32.mxu0 0.0
    %269 = vmatmul.mubr.f32.gmra.mrb[0].mxu0 %v200
    %v270 = vpop.f32.mrb[0].mxu0
    %v271 = vadd.f32 %v155, %v270
    %v272 = vpop.f32.mrb[0].mxu0
    %273 = vmatprep.mubr.f32.mxu0 0.0
    %274 = vmatmul.mubr.f32.gmra.mrb[0].mxu0 %v202
    %v275 = vpop.f32.mrb[0].mxu0
    %v276 = vadd.f32 %v155, %v275
    %v277 = vpop.f32.mrb[0].mxu0
    %278 = vdwg.mxu0
    %v281 = vcombine.high %v271, %v271
    %v283 = vunpack.c.l.s4 1983009808
    %v284 = vunpack.c.0.s8 %v283
    %v285 = vlaneseq
    %v286 = vshrl.u32 %v285, 7
    %v287 = vsub.s32 %v284, %v286
    %v288 = vrot.slane %v271, %v287
    %v290 = vunpack.c.l.s4 1983009808
    %v291 = vunpack.c.0.s8 %v290
    %v292 = vlaneseq
    %v293 = vshrl.u32 %v292, 7
    %v294 = vsub.s32 %v291, %v293
    %v295 = vrot.slane %v281, %v294
    %v296 = vcombine.high %v288, %v288
    %v297 = vcombine.high %v295, %v295
    %v298 = vcombine.high %v276, %v276
    %v300 = vunpack.c.l.s4 1983009808
    %v301 = vunpack.c.0.s8 %v300
    %v302 = vlaneseq
    %v303 = vshrl.u32 %v302, 7
    %v304 = vsub.s32 %v301, %v303
    %v305 = vrot.slane %v276, %v304
    %v307 = vunpack.c.l.s4 1983009808
    %v308 = vunpack.c.0.s8 %v307
    %v309 = vlaneseq
    %v310 = vshrl.u32 %v309, 7
    %v311 = vsub.s32 %v308, %v310
    %v312 = vrot.slane %v298, %v311
    %v313 = vcombine.high %v305, %v305
    %v314 = vcombine.high %v312, %v312
    %323 = vst [vmem:[#allocation2] sm:$0x3] %v288
    %324 = vst [vmem:[#allocation2 + $0x2] sm:$0x3] %v296
    %325 = vst [vmem:[#allocation2 + $0x4] sm:$0x3] %v295
    %326 = vst [vmem:[#allocation2 + $0x6] sm:$0x3] %v297
    %327 = vst [vmem:[#allocation2 + $0x8] sm:$0x3] %v305
    %328 = vst [vmem:[#allocation2 + $0xa] sm:$0x3] %v313
    %329 = vst [vmem:[#allocation2 + $0xc] sm:$0x3] %v312
    %330 = vst [vmem:[#allocation2 + $0xe] sm:$0x3] %v314
    %v331 = vld [vmem:[#allocation11] sm:$0xff]
    %v332 = vld [vmem:[#allocation11 + $0x8] sm:$0xff]
    %v333 = vld [vmem:[#allocation11 + $0x10] sm:$0xff]
    %v334 = vld [vmem:[#allocation11 + $0x18] sm:$0xff]
    %v335 = vld [vmem:[#allocation4] sm:$0x3]
    %v336 = vld [vmem:[#allocation5] sm:$0x3]
    %v337 = vld [vmem:[#allocation2] sm:$0x3]
    %v339 = vsel %vm199, %v335, 0
    %341 = vmatprep.subr.mxu0 0.0
    %342 = vmatpush1.msra.mxu0 %v331
    %343 = vmatprep.subr.mxu0 0.0
    %344 = vmatpush1.msra.mxu0 %v332
    %345 = vmatprep.subr.mxu0 0.0
    %346 = vmatpush1.msra.mxu0 %v333
    %347 = vmatprep.subr.mxu0 0.0
    %348 = vmatpush1.msra.mxu0 %v334
    %349 = vmatprep.subr.mxu0 0.0
    %350 = vmatpush1.msra.mxu0 0.0
    %351 = vmatprep.subr.mxu0 0.0
    %352 = vmatpush1.msra.mxu0 0.0
    %353 = vmatprep.subr.mxu0 0.0
    %354 = vmatpush1.msra.mxu0 0.0
    %355 = vmatprep.subr.mxu0 0.0
    %356 = vmatpush1.msra.mxu0 0.0
    %357 = vmatprep.subr.mxu0 0.0
    %358 = vmatpush1.msra.mxu0 0.0
    %359 = vmatprep.subr.mxu0 0.0
    %360 = vmatpush1.msra.mxu0 0.0
    %361 = vmatprep.subr.mxu0 0.0
    %362 = vmatpush1.msra.mxu0 0.0
    %363 = vmatprep.subr.mxu0 0.0
    %364 = vmatpush1.msra.mxu0 0.0
    %365 = vmatprep.subr.mxu0 0.0
    %366 = vmatpush1.msra.mxu0 0.0
    %367 = vmatprep.subr.mxu0 0.0
    %368 = vmatpush1.msra.mxu0 0.0
    %369 = vmatprep.subr.mxu0 0.0
    %370 = vmatpush1.msra.mxu0 0.0
    %371 = vmatprep.subr.mxu0 0.0
    %372 = vmatpush1.msra.mxu0 0.0
    %373 = vmatprep.subr.mxu0 0.0
    %374 = vmatpush1.msra.mxu0 0.0
    %375 = vmatprep.subr.mxu0 0.0
    %376 = vmatpush1.msra.mxu0 0.0
    %377 = vmatprep.subr.mxu0 0.0
    %378 = vmatpush1.msra.mxu0 0.0
    %379 = vmatprep.subr.mxu0 0.0
    %380 = vmatpush1.msra.mxu0 0.0
    %381 = vmatprep.subr.mxu0 0.0
    %382 = vmatpush1.msra.mxu0 0.0
    %383 = vmatprep.subr.mxu0 0.0
    %384 = vmatpush1.msra.mxu0 0.0
    %385 = vmatprep.subr.mxu0 0.0
    %386 = vmatpush1.msra.mxu0 0.0
    %387 = vmatprep.subr.mxu0 0.0
    %388 = vmatpush1.msra.mxu0 0.0
    %389 = vmatprep.subr.mxu0 0.0
    %390 = vmatpush1.msra.mxu0 0.0
    %391 = vmatprep.subr.mxu0 0.0
    %392 = vmatpush1.msra.mxu0 0.0
    %393 = vmatprep.subr.mxu0 0.0
    %394 = vmatpush1.msra.mxu0 0.0
    %395 = vmatprep.subr.mxu0 0.0
    %396 = vmatpush1.msra.mxu0 0.0
    %397 = vmatprep.subr.mxu0 0.0
    %398 = vmatpush1.msra.mxu0 0.0
    %399 = vmatprep.subr.mxu0 0.0
    %400 = vmatpush1.msra.mxu0 0.0
    %401 = vmatprep.subr.mxu0 0.0
    %402 = vmatpush1.msra.mxu0 0.0
    %403 = vmatprep.subr.mxu0 0.0
    %404 = vmatpush1.msra.mxu0 0.0
    %405 = vmatprep.mubr.f32.mxu0 0.0
    %406 = vmatmul.mubr.f32.gmra.mrb[0].mxu0 %v339
    %v407 = vpop.f32.mrb[0].mxu0
    %v408 = vadd.f32 0.0, %v407
    %v409 = vpop.f32.mrb[0].mxu0
    %410 = vdwg.mxu0
    %v411 = vadd.f32 %v337, %v408
    %v412 = vxor.u32 %v411, 2147483648
    %v413 = vmul.f32 %v412, 1.442695
    %v414 = vpow.pop %v413
    %v415 = vadd.f32 %v414, 1.0
    %v416 = vrcp.pop %v415
    %v417 = vmul.f32 1.0, %v416
    %v418 = vtanh.pop %v411
    %420 = vrot.lane.b32.xlu0 %v336, 32
    %v421 = vpop.permute.xlu0 %420
    %v423 = vmul.f32 %v417, %v421
    %425 = vrot.lane.b32.xlu0 %v418, 64
    %v426 = vpop.permute.xlu0 %425
    %v428 = vmul.f32 %v417, %v426
    %430 = vrot.lane.b32.xlu0 %v428, 32
    %v431 = vpop.permute.xlu0 %430
    %v433 = vadd.f32 %v423, %v431
    %v434 = vtanh.pop %v433
    %436 = vrot.lane.b32.xlu0 %v434, 64
    %v437 = vpop.permute.xlu0 %436
    %v439 = vmul.f32 %v417, %v437
    %441 = vrot.lane.b32.xlu0 %v439, 32
    %v442 = vpop.permute.xlu0 %441
    %vm444 = vcmask 254976
    %445 = vst.msk [vmem:[#allocation3] sm:$0x3] %vm444, %v442
    %s446 = scalar_lea.vmem [#allocation2], 2
    %v447 = vld [vmem:[%s446] sm:$0x3]
    %v448 = vsel %vm199, %v442, 0
    %450 = vmatprep.subr.mxu0 0.0
    %451 = vmatpush1.msra.mxu0 %v331
    %452 = vmatprep.subr.mxu0 0.0
    %453 = vmatpush1.msra.mxu0 %v332
    %454 = vmatprep.subr.mxu0 0.0
    %455 = vmatpush1.msra.mxu0 %v333
    %456 = vmatprep.subr.mxu0 0.0
    %457 = vmatpush1.msra.mxu0 %v334
    %458 = vmatprep.subr.mxu0 0.0
    %459 = vmatpush1.msra.mxu0 0.0
    %460 = vmatprep.subr.mxu0 0.0
    %461 = vmatpush1.msra.mxu0 0.0
    %462 = vmatprep.subr.mxu0 0.0
    %463 = vmatpush1.msra.mxu0 0.0
    %464 = vmatprep.subr.mxu0 0.0
    %465 = vmatpush1.msra.mxu0 0.0
    %466 = vmatprep.subr.mxu0 0.0
    %467 = vmatpush1.msra.mxu0 0.0
    %468 = vmatprep.subr.mxu0 0.0
    %469 = vmatpush1.msra.mxu0 0.0
    %470 = vmatprep.subr.mxu0 0.0
    %471 = vmatpush1.msra.mxu0 0.0
    %472 = vmatprep.subr.mxu0 0.0
    %473 = vmatpush1.msra.mxu0 0.0
    %474 = vmatprep.subr.mxu0 0.0
    %475 = vmatpush1.msra.mxu0 0.0
    %476 = vmatprep.subr.mxu0 0.0
    %477 = vmatpush1.msra.mxu0 0.0
    %478 = vmatprep.subr.mxu0 0.0
    %479 = vmatpush1.msra.mxu0 0.0
    %480 = vmatprep.subr.mxu0 0.0
    %481 = vmatpush1.msra.mxu0 0.0
    %482 = vmatprep.subr.mxu0 0.0
    %483 = vmatpush1.msra.mxu0 0.0
    %484 = vmatprep.subr.mxu0 0.0
    %485 = vmatpush1.msra.mxu0 0.0
    %486 = vmatprep.subr.mxu0 0.0
    %487 = vmatpush1.msra.mxu0 0.0
    %488 = vmatprep.subr.mxu0 0.0
    %489 = vmatpush1.msra.mxu0 0.0
    %490 = vmatprep.subr.mxu0 0.0
    %491 = vmatpush1.msra.mxu0 0.0
    %492 = vmatprep.subr.mxu0 0.0
    %493 = vmatpush1.msra.mxu0 0.0
    %494 = vmatprep.subr.mxu0 0.0
    %495 = vmatpush1.msra.mxu0 0.0
    %496 = vmatprep.subr.mxu0 0.0
    %497 = vmatpush1.msra.mxu0 0.0
    %498 = vmatprep.subr.mxu0 0.0
    %499 = vmatpush1.msra.mxu0 0.0
    %500 = vmatprep.subr.mxu0 0.0
    %501 = vmatpush1.msra.mxu0 0.0
    %502 = vmatprep.subr.mxu0 0.0
    %503 = vmatpush1.msra.mxu0 0.0
    %504 = vmatprep.subr.mxu0 0.0
    %505 = vmatpush1.msra.mxu0 0.0
    %506 = vmatprep.subr.mxu0 0.0
    %507 = vmatpush1.msra.mxu0 0.0
    %508 = vmatprep.subr.mxu0 0.0
    %509 = vmatpush1.msra.mxu0 0.0
    %510 = vmatprep.subr.mxu0 0.0
    %511 = vmatpush1.msra.mxu0 0.0
    %512 = vmatprep.subr.mxu0 0.0
    %513 = vmatpush1.msra.mxu0 0.0
    %514 = vmatprep.mubr.f32.mxu0 0.0
    %515 = vmatmul.mubr.f32.gmra.mrb[0].mxu0 %v448
    %v516 = vpop.f32.mrb[0].mxu0
    %v517 = vadd.f32 0.0, %v516
    %v518 = vpop.f32.mrb[0].mxu0
    %519 = vdwg.mxu0
    %v520 = vadd.f32 %v447, %v517
    %v521 = vxor.u32 %v520, 2147483648
    %v522 = vmul.f32 %v521, 1.442695
    %v523 = vpow.pop %v522
    %v524 = vadd.f32 %v523, 1.0
    %v525 = vrcp.pop %v524
    %v526 = vmul.f32 1.0, %v525
    %v527 = vtanh.pop %v520
    %v528 = vmul.f32 %v526, %v433
    %530 = vrot.lane.b32.xlu0 %v527, 64
    %v531 = vpop.permute.xlu0 %530
    %v533 = vmul.f32 %v526, %v531
    %535 = vrot.lane.b32.xlu0 %v533, 32
    %v536 = vpop.permute.xlu0 %535
    %v538 = vadd.f32 %v528, %v536
    %v539 = vtanh.pop %v538
    %541 = vrot.lane.b32.xlu0 %v539, 64
    %v542 = vpop.permute.xlu0 %541
    %v544 = vmul.f32 %v526, %v542
    %546 = vrot.lane.b32.xlu0 %v544, 32
    %v547 = vpop.permute.xlu0 %546
    %s549 = scalar_lea.vmem [#allocation3], 2
    %550 = vst.msk [vmem:[%s549] sm:$0x3] %vm444, %v547
    %s551 = scalar_lea.vmem [#allocation2], 4
    %v552 = vld [vmem:[%s551] sm:$0x3]
    %v553 = vsel %vm199, %v547, 0
    %555 = vmatprep.subr.mxu0 0.0
    %556 = vmatpush1.msra.mxu0 %v331
    %557 = vmatprep.subr.mxu0 0.0
    %558 = vmatpush1.msra.mxu0 %v332
    %559 = vmatprep.subr.mxu0 0.0
    %560 = vmatpush1.msra.mxu0 %v333
    %561 = vmatprep.subr.mxu0 0.0
    %562 = vmatpush1.msra.mxu0 %v334
    %563 = vmatprep.subr.mxu0 0.0
    %564 = vmatpush1.msra.mxu0 0.0
    %565 = vmatprep.subr.mxu0 0.0
    %566 = vmatpush1.msra.mxu0 0.0
    %567 = vmatprep.subr.mxu0 0.0
    %568 = vmatpush1.msra.mxu0 0.0
    %569 = vmatprep.subr.mxu0 0.0
    %570 = vmatpush1.msra.mxu0 0.0
    %571 = vmatprep.subr.mxu0 0.0
    %572 = vmatpush1.msra.mxu0 0.0
    %573 = vmatprep.subr.mxu0 0.0
    %574 = vmatpush1.msra.mxu0 0.0
    %575 = vmatprep.subr.mxu0 0.0
    %576 = vmatpush1.msra.mxu0 0.0
    %577 = vmatprep.subr.mxu0 0.0
    %578 = vmatpush1.msra.mxu0 0.0
    %579 = vmatprep.subr.mxu0 0.0
    %580 = vmatpush1.msra.mxu0 0.0
    %581 = vmatprep.subr.mxu0 0.0
    %582 = vmatpush1.msra.mxu0 0.0
    %583 = vmatprep.subr.mxu0 0.0
    %584 = vmatpush1.msra.mxu0 0.0
    %585 = vmatprep.subr.mxu0 0.0
    %586 = vmatpush1.msra.mxu0 0.0
    %587 = vmatprep.subr.mxu0 0.0
    %588 = vmatpush1.msra.mxu0 0.0
    %589 = vmatprep.subr.mxu0 0.0
    %590 = vmatpush1.msra.mxu0 0.0
    %591 = vmatprep.subr.mxu0 0.0
    %592 = vmatpush1.msra.mxu0 0.0
    %593 = vmatprep.subr.mxu0 0.0
    %594 = vmatpush1.msra.mxu0 0.0
    %595 = vmatprep.subr.mxu0 0.0
    %596 = vmatpush1.msra.mxu0 0.0
    %597 = vmatprep.subr.mxu0 0.0
    %598 = vmatpush1.msra.mxu0 0.0
    %599 = vmatprep.subr.mxu0 0.0
    %600 = vmatpush1.msra.mxu0 0.0
    %601 = vmatprep.subr.mxu0 0.0
    %602 = vmatpush1.msra.mxu0 0.0
    %603 = vmatprep.subr.mxu0 0.0
    %604 = vmatpush1.msra.mxu0 0.0
    %605 = vmatprep.subr.mxu0 0.0
    %606 = vmatpush1.msra.mxu0 0.0
    %607 = vmatprep.subr.mxu0 0.0
    %608 = vmatpush1.msra.mxu0 0.0
    %609 = vmatprep.subr.mxu0 0.0
    %610 = vmatpush1.msra.mxu0 0.0
    %611 = vmatprep.subr.mxu0 0.0
    %612 = vmatpush1.msra.mxu0 0.0
    %613 = vmatprep.subr.mxu0 0.0
    %614 = vmatpush1.msra.mxu0 0.0
    %615 = vmatprep.subr.mxu0 0.0
    %616 = vmatpush1.msra.mxu0 0.0
    %617 = vmatprep.subr.mxu0 0.0
    %618 = vmatpush1.msra.mxu0 0.0
    %619 = vmatprep.mubr.f32.mxu0 0.0
    %620 = vmatmul.mubr.f32.gmra.mrb[0].mxu0 %v553
    %v621 = vpop.f32.mrb[0].mxu0
    %v622 = vadd.f32 0.0, %v621
    %v623 = vpop.f32.mrb[0].mxu0
    %624 = vdwg.mxu0
    %v625 = vadd.f32 %v552, %v622
    %v626 = vxor.u32 %v625, 2147483648
    %v627 = vmul.f32 %v626, 1.442695
    %v628 = vpow.pop %v627
    %v629 = vadd.f32 %v628, 1.0
    %v630 = vrcp.pop %v629
    %v631 = vmul.f32 1.0, %v630
    %v632 = vtanh.pop %v625
    %v633 = vmul.f32 %v631, %v538
    %635 = vrot.lane.b32.xlu0 %v632, 64
    %v636 = vpop.permute.xlu0 %635
    %v638 = vmul.f32 %v631, %v636
    %640 = vrot.lane.b32.xlu0 %v638, 32
    %v641 = vpop.permute.xlu0 %640
    %v643 = vadd.f32 %v633, %v641
    %v644 = vtanh.pop %v643
    %646 = vrot.lane.b32.xlu0 %v644, 64
    %v647 = vpop.permute.xlu0 %646
    %v649 = vmul.f32 %v631, %v647
    %651 = vrot.lane.b32.xlu0 %v649, 32
    %v652 = vpop.permute.xlu0 %651
    %s654 = scalar_lea.vmem [#allocation3], 4
    %655 = vst.msk [vmem:[%s654] sm:$0x3] %vm444, %v652
    %s656 = scalar_lea.vmem [#allocation2], 6
    %v657 = vld [vmem:[%s656] sm:$0x3]
    %v658 = vsel %vm199, %v652, 0
    %660 = vmatprep.subr.mxu0 0.0
    %661 = vmatpush1.msra.mxu0 %v331
    %662 = vmatprep.subr.mxu0 0.0
    %663 = vmatpush1.msra.mxu0 %v332
    %664 = vmatprep.subr.mxu0 0.0
    %665 = vmatpush1.msra.mxu0 %v333
    %666 = vmatprep.subr.mxu0 0.0
    %667 = vmatpush1.msra.mxu0 %v334
    %668 = vmatprep.subr.mxu0 0.0
    %669 = vmatpush1.msra.mxu0 0.0
    %670 = vmatprep.subr.mxu0 0.0
    %671 = vmatpush1.msra.mxu0 0.0
    %672 = vmatprep.subr.mxu0 0.0
    %673 = vmatpush1.msra.mxu0 0.0
    %674 = vmatprep.subr.mxu0 0.0
    %675 = vmatpush1.msra.mxu0 0.0
    %676 = vmatprep.subr.mxu0 0.0
    %677 = vmatpush1.msra.mxu0 0.0
    %678 = vmatprep.subr.mxu0 0.0
    %679 = vmatpush1.msra.mxu0 0.0
    %680 = vmatprep.subr.mxu0 0.0
    %681 = vmatpush1.msra.mxu0 0.0
    %682 = vmatprep.subr.mxu0 0.0
    %683 = vmatpush1.msra.mxu0 0.0
    %684 = vmatprep.subr.mxu0 0.0
    %685 = vmatpush1.msra.mxu0 0.0
    %686 = vmatprep.subr.mxu0 0.0
    %687 = vmatpush1.msra.mxu0 0.0
    %688 = vmatprep.subr.mxu0 0.0
    %689 = vmatpush1.msra.mxu0 0.0
    %690 = vmatprep.subr.mxu0 0.0
    %691 = vmatpush1.msra.mxu0 0.0
    %692 = vmatprep.subr.mxu0 0.0
    %693 = vmatpush1.msra.mxu0 0.0
    %694 = vmatprep.subr.mxu0 0.0
    %695 = vmatpush1.msra.mxu0 0.0
    %696 = vmatprep.subr.mxu0 0.0
    %697 = vmatpush1.msra.mxu0 0.0
    %698 = vmatprep.subr.mxu0 0.0
    %699 = vmatpush1.msra.mxu0 0.0
    %700 = vmatprep.subr.mxu0 0.0
    %701 = vmatpush1.msra.mxu0 0.0
    %702 = vmatprep.subr.mxu0 0.0
    %703 = vmatpush1.msra.mxu0 0.0
    %704 = vmatprep.subr.mxu0 0.0
    %705 = vmatpush1.msra.mxu0 0.0
    %706 = vmatprep.subr.mxu0 0.0
    %707 = vmatpush1.msra.mxu0 0.0
    %708 = vmatprep.subr.mxu0 0.0
    %709 = vmatpush1.msra.mxu0 0.0
    %710 = vmatprep.subr.mxu0 0.0
    %711 = vmatpush1.msra.mxu0 0.0
    %712 = vmatprep.subr.mxu0 0.0
    %713 = vmatpush1.msra.mxu0 0.0
    %714 = vmatprep.subr.mxu0 0.0
    %715 = vmatpush1.msra.mxu0 0.0
    %716 = vmatprep.subr.mxu0 0.0
    %717 = vmatpush1.msra.mxu0 0.0
    %718 = vmatprep.subr.mxu0 0.0
    %719 = vmatpush1.msra.mxu0 0.0
    %720 = vmatprep.subr.mxu0 0.0
    %721 = vmatpush1.msra.mxu0 0.0
    %722 = vmatprep.subr.mxu0 0.0
    %723 = vmatpush1.msra.mxu0 0.0
    %724 = vmatprep.mubr.f32.mxu0 0.0
    %725 = vmatmul.mubr.f32.gmra.mrb[0].mxu0 %v658
    %v726 = vpop.f32.mrb[0].mxu0
    %v727 = vadd.f32 0.0, %v726
    %v728 = vpop.f32.mrb[0].mxu0
    %729 = vdwg.mxu0
    %v730 = vadd.f32 %v657, %v727
    %v731 = vxor.u32 %v730, 2147483648
    %v732 = vmul.f32 %v731, 1.442695
    %v733 = vpow.pop %v732
    %v734 = vadd.f32 %v733, 1.0
    %v735 = vrcp.pop %v734
    %v736 = vmul.f32 1.0, %v735
    %v737 = vtanh.pop %v730
    %v738 = vmul.f32 %v736, %v643
    %740 = vrot.lane.b32.xlu0 %v737, 64
    %v741 = vpop.permute.xlu0 %740
    %v743 = vmul.f32 %v736, %v741
    %745 = vrot.lane.b32.xlu0 %v743, 32
    %v746 = vpop.permute.xlu0 %745
    %v748 = vadd.f32 %v738, %v746
    %v749 = vtanh.pop %v748
    %751 = vrot.lane.b32.xlu0 %v749, 64
    %v752 = vpop.permute.xlu0 %751
    %v754 = vmul.f32 %v736, %v752
    %756 = vrot.lane.b32.xlu0 %v754, 32
    %v757 = vpop.permute.xlu0 %756
    %s759 = scalar_lea.vmem [#allocation3], 6
    %760 = vst.msk [vmem:[%s759] sm:$0x3] %vm444, %v757
    %s761 = scalar_lea.vmem [#allocation2], 8
    %v762 = vld [vmem:[%s761] sm:$0x3]
    %v763 = vsel %vm199, %v757, 0
    %765 = vmatprep.subr.mxu0 0.0
    %766 = vmatpush1.msra.mxu0 %v331
    %767 = vmatprep.subr.mxu0 0.0
    %768 = vmatpush1.msra.mxu0 %v332
    %769 = vmatprep.subr.mxu0 0.0
    %770 = vmatpush1.msra.mxu0 %v333
    %771 = vmatprep.subr.mxu0 0.0
    %772 = vmatpush1.msra.mxu0 %v334
    %773 = vmatprep.subr.mxu0 0.0
    %774 = vmatpush1.msra.mxu0 0.0
    %775 = vmatprep.subr.mxu0 0.0
    %776 = vmatpush1.msra.mxu0 0.0
    %777 = vmatprep.subr.mxu0 0.0
    %778 = vmatpush1.msra.mxu0 0.0
    %779 = vmatprep.subr.mxu0 0.0
    %780 = vmatpush1.msra.mxu0 0.0
    %781 = vmatprep.subr.mxu0 0.0
    %782 = vmatpush1.msra.mxu0 0.0
    %783 = vmatprep.subr.mxu0 0.0
    %784 = vmatpush1.msra.mxu0 0.0
    %785 = vmatprep.subr.mxu0 0.0
    %786 = vmatpush1.msra.mxu0 0.0
    %787 = vmatprep.subr.mxu0 0.0
    %788 = vmatpush1.msra.mxu0 0.0
    %789 = vmatprep.subr.mxu0 0.0
    %790 = vmatpush1.msra.mxu0 0.0
    %791 = vmatprep.subr.mxu0 0.0
    %792 = vmatpush1.msra.mxu0 0.0
    %793 = vmatprep.subr.mxu0 0.0
    %794 = vmatpush1.msra.mxu0 0.0
    %795 = vmatprep.subr.mxu0 0.0
    %796 = vmatpush1.msra.mxu0 0.0
    %797 = vmatprep.subr.mxu0 0.0
    %798 = vmatpush1.msra.mxu0 0.0
    %799 = vmatprep.subr.mxu0 0.0
    %800 = vmatpush1.msra.mxu0 0.0
    %801 = vmatprep.subr.mxu0 0.0
    %802 = vmatpush1.msra.mxu0 0.0
    %803 = vmatprep.subr.mxu0 0.0
    %804 = vmatpush1.msra.mxu0 0.0
    %805 = vmatprep.subr.mxu0 0.0
    %806 = vmatpush1.msra.mxu0 0.0
    %807 = vmatprep.subr.mxu0 0.0
    %808 = vmatpush1.msra.mxu0 0.0
    %809 = vmatprep.subr.mxu0 0.0
    %810 = vmatpush1.msra.mxu0 0.0
    %811 = vmatprep.subr.mxu0 0.0
    %812 = vmatpush1.msra.mxu0 0.0
    %813 = vmatprep.subr.mxu0 0.0
    %814 = vmatpush1.msra.mxu0 0.0
    %815 = vmatprep.subr.mxu0 0.0
    %816 = vmatpush1.msra.mxu0 0.0
    %817 = vmatprep.subr.mxu0 0.0
    %818 = vmatpush1.msra.mxu0 0.0
    %819 = vmatprep.subr.mxu0 0.0
    %820 = vmatpush1.msra.mxu0 0.0
    %821 = vmatprep.subr.mxu0 0.0
    %822 = vmatpush1.msra.mxu0 0.0
    %823 = vmatprep.subr.mxu0 0.0
    %824 = vmatpush1.msra.mxu0 0.0
    %825 = vmatprep.subr.mxu0 0.0
    %826 = vmatpush1.msra.mxu0 0.0
    %827 = vmatprep.subr.mxu0 0.0
    %828 = vmatpush1.msra.mxu0 0.0
    %829 = vmatprep.mubr.f32.mxu0 0.0
    %830 = vmatmul.mubr.f32.gmra.mrb[0].mxu0 %v763
    %v831 = vpop.f32.mrb[0].mxu0
    %v832 = vadd.f32 0.0, %v831
    %v833 = vpop.f32.mrb[0].mxu0
    %834 = vdwg.mxu0
    %v835 = vadd.f32 %v762, %v832
    %v836 = vxor.u32 %v835, 2147483648
    %v837 = vmul.f32 %v836, 1.442695
    %v838 = vpow.pop %v837
    %v839 = vadd.f32 %v838, 1.0
    %v840 = vrcp.pop %v839
    %v841 = vmul.f32 1.0, %v840
    %v842 = vtanh.pop %v835
    %v843 = vmul.f32 %v841, %v748
    %845 = vrot.lane.b32.xlu0 %v842, 64
    %v846 = vpop.permute.xlu0 %845
    %v848 = vmul.f32 %v841, %v846
    %850 = vrot.lane.b32.xlu0 %v848, 32
    %v851 = vpop.permute.xlu0 %850
    %v853 = vadd.f32 %v843, %v851
    %v854 = vtanh.pop %v853
    %856 = vrot.lane.b32.xlu0 %v854, 64
    %v857 = vpop.permute.xlu0 %856
    %v859 = vmul.f32 %v841, %v857
    %861 = vrot.lane.b32.xlu0 %v859, 32
    %v862 = vpop.permute.xlu0 %861
    %s864 = scalar_lea.vmem [#allocation3], 8
    %865 = vst.msk [vmem:[%s864] sm:$0x3] %vm444, %v862
    %s866 = scalar_lea.vmem [#allocation2], 10
    %v867 = vld [vmem:[%s866] sm:$0x3]
    %v868 = vsel %vm199, %v862, 0
    %870 = vmatprep.subr.mxu0 0.0
    %871 = vmatpush1.msra.mxu0 %v331
    %872 = vmatprep.subr.mxu0 0.0
    %873 = vmatpush1.msra.mxu0 %v332
    %874 = vmatprep.subr.mxu0 0.0
    %875 = vmatpush1.msra.mxu0 %v333
    %876 = vmatprep.subr.mxu0 0.0
    %877 = vmatpush1.msra.mxu0 %v334
    %878 = vmatprep.subr.mxu0 0.0
    %879 = vmatpush1.msra.mxu0 0.0
    %880 = vmatprep.subr.mxu0 0.0
    %881 = vmatpush1.msra.mxu0 0.0
    %882 = vmatprep.subr.mxu0 0.0
    %883 = vmatpush1.msra.mxu0 0.0
    %884 = vmatprep.subr.mxu0 0.0
    %885 = vmatpush1.msra.mxu0 0.0
    %886 = vmatprep.subr.mxu0 0.0
    %887 = vmatpush1.msra.mxu0 0.0
    %888 = vmatprep.subr.mxu0 0.0
    %889 = vmatpush1.msra.mxu0 0.0
    %890 = vmatprep.subr.mxu0 0.0
    %891 = vmatpush1.msra.mxu0 0.0
    %892 = vmatprep.subr.mxu0 0.0
    %893 = vmatpush1.msra.mxu0 0.0
    %894 = vmatprep.subr.mxu0 0.0
    %895 = vmatpush1.msra.mxu0 0.0
    %896 = vmatprep.subr.mxu0 0.0
    %897 = vmatpush1.msra.mxu0 0.0
    %898 = vmatprep.subr.mxu0 0.0
    %899 = vmatpush1.msra.mxu0 0.0
    %900 = vmatprep.subr.mxu0 0.0
    %901 = vmatpush1.msra.mxu0 0.0
    %902 = vmatprep.subr.mxu0 0.0
    %903 = vmatpush1.msra.mxu0 0.0
    %904 = vmatprep.subr.mxu0 0.0
    %905 = vmatpush1.msra.mxu0 0.0
    %906 = vmatprep.subr.mxu0 0.0
    %907 = vmatpush1.msra.mxu0 0.0
    %908 = vmatprep.subr.mxu0 0.0
    %909 = vmatpush1.msra.mxu0 0.0
    %910 = vmatprep.subr.mxu0 0.0
    %911 = vmatpush1.msra.mxu0 0.0
    %912 = vmatprep.subr.mxu0 0.0
    %913 = vmatpush1.msra.mxu0 0.0
    %914 = vmatprep.subr.mxu0 0.0
    %915 = vmatpush1.msra.mxu0 0.0
    %916 = vmatprep.subr.mxu0 0.0
    %917 = vmatpush1.msra.mxu0 0.0
    %918 = vmatprep.subr.mxu0 0.0
    %919 = vmatpush1.msra.mxu0 0.0
    %920 = vmatprep.subr.mxu0 0.0
    %921 = vmatpush1.msra.mxu0 0.0
    %922 = vmatprep.subr.mxu0 0.0
    %923 = vmatpush1.msra.mxu0 0.0
    %924 = vmatprep.subr.mxu0 0.0
    %925 = vmatpush1.msra.mxu0 0.0
    %926 = vmatprep.subr.mxu0 0.0
    %927 = vmatpush1.msra.mxu0 0.0
    %928 = vmatprep.subr.mxu0 0.0
    %929 = vmatpush1.msra.mxu0 0.0
    %930 = vmatprep.subr.mxu0 0.0
    %931 = vmatpush1.msra.mxu0 0.0
    %932 = vmatprep.subr.mxu0 0.0
    %933 = vmatpush1.msra.mxu0 0.0
    %934 = vmatprep.mubr.f32.mxu0 0.0
    %935 = vmatmul.mubr.f32.gmra.mrb[0].mxu0 %v868
    %v936 = vpop.f32.mrb[0].mxu0
    %v937 = vadd.f32 0.0, %v936
    %v938 = vpop.f32.mrb[0].mxu0
    %939 = vdwg.mxu0
    %v940 = vadd.f32 %v867, %v937
    %v941 = vxor.u32 %v940, 2147483648
    %v942 = vmul.f32 %v941, 1.442695
    %v943 = vpow.pop %v942
    %v944 = vadd.f32 %v943, 1.0
    %v945 = vrcp.pop %v944
    %v946 = vmul.f32 1.0, %v945
    %v947 = vtanh.pop %v940
    %v948 = vmul.f32 %v946, %v853
    %950 = vrot.lane.b32.xlu0 %v947, 64
    %v951 = vpop.permute.xlu0 %950
    %v953 = vmul.f32 %v946, %v951
    %955 = vrot.lane.b32.xlu0 %v953, 32
    %v956 = vpop.permute.xlu0 %955
    %v958 = vadd.f32 %v948, %v956
    %v959 = vtanh.pop %v958
    %961 = vrot.lane.b32.xlu0 %v959, 64
    %v962 = vpop.permute.xlu0 %961
    %v964 = vmul.f32 %v946, %v962
    %966 = vrot.lane.b32.xlu0 %v964, 32
    %v967 = vpop.permute.xlu0 %966
    %s969 = scalar_lea.vmem [#allocation3], 10
    %970 = vst.msk [vmem:[%s969] sm:$0x3] %vm444, %v967
    %s971 = scalar_lea.vmem [#allocation2], 12
    %v972 = vld [vmem:[%s971] sm:$0x3]
    %v973 = vsel %vm199, %v967, 0
    %975 = vmatprep.subr.mxu0 0.0
    %976 = vmatpush1.msra.mxu0 %v331
    %977 = vmatprep.subr.mxu0 0.0
    %978 = vmatpush1.msra.mxu0 %v332
    %979 = vmatprep.subr.mxu0 0.0
    %980 = vmatpush1.msra.mxu0 %v333
    %981 = vmatprep.subr.mxu0 0.0
    %982 = vmatpush1.msra.mxu0 %v334
    %983 = vmatprep.subr.mxu0 0.0
    %984 = vmatpush1.msra.mxu0 0.0
    %985 = vmatprep.subr.mxu0 0.0
    %986 = vmatpush1.msra.mxu0 0.0
    %987 = vmatprep.subr.mxu0 0.0
    %988 = vmatpush1.msra.mxu0 0.0
    %989 = vmatprep.subr.mxu0 0.0
    %990 = vmatpush1.msra.mxu0 0.0
    %991 = vmatprep.subr.mxu0 0.0
    %992 = vmatpush1.msra.mxu0 0.0
    %993 = vmatprep.subr.mxu0 0.0
    %994 = vmatpush1.msra.mxu0 0.0
    %995 = vmatprep.subr.mxu0 0.0
    %996 = vmatpush1.msra.mxu0 0.0
    %997 = vmatprep.subr.mxu0 0.0
    %998 = vmatpush1.msra.mxu0 0.0
    %999 = vmatprep.subr.mxu0 0.0
    %1000 = vmatpush1.msra.mxu0 0.0
    %1001 = vmatprep.subr.mxu0 0.0
    %1002 = vmatpush1.msra.mxu0 0.0
    %1003 = vmatprep.subr.mxu0 0.0
    %1004 = vmatpush1.msra.mxu0 0.0
    %1005 = vmatprep.subr.mxu0 0.0
    %1006 = vmatpush1.msra.mxu0 0.0
    %1007 = vmatprep.subr.mxu0 0.0
    %1008 = vmatpush1.msra.mxu0 0.0
    %1009 = vmatprep.subr.mxu0 0.0
    %1010 = vmatpush1.msra.mxu0 0.0
    %1011 = vmatprep.subr.mxu0 0.0
    %1012 = vmatpush1.msra.mxu0 0.0
    %1013 = vmatprep.subr.mxu0 0.0
    %1014 = vmatpush1.msra.mxu0 0.0
    %1015 = vmatprep.subr.mxu0 0.0
    %1016 = vmatpush1.msra.mxu0 0.0
    %1017 = vmatprep.subr.mxu0 0.0
    %1018 = vmatpush1.msra.mxu0 0.0
    %1019 = vmatprep.subr.mxu0 0.0
    %1020 = vmatpush1.msra.mxu0 0.0
    %1021 = vmatprep.subr.mxu0 0.0
    %1022 = vmatpush1.msra.mxu0 0.0
    %1023 = vmatprep.subr.mxu0 0.0
    %1024 = vmatpush1.msra.mxu0 0.0
    %1025 = vmatprep.subr.mxu0 0.0
    %1026 = vmatpush1.msra.mxu0 0.0
    %1027 = vmatprep.subr.mxu0 0.0
    %1028 = vmatpush1.msra.mxu0 0.0
    %1029 = vmatprep.subr.mxu0 0.0
    %1030 = vmatpush1.msra.mxu0 0.0
    %1031 = vmatprep.subr.mxu0 0.0
    %1032 = vmatpush1.msra.mxu0 0.0
    %1033 = vmatprep.subr.mxu0 0.0
    %1034 = vmatpush1.msra.mxu0 0.0
    %1035 = vmatprep.subr.mxu0 0.0
    %1036 = vmatpush1.msra.mxu0 0.0
    %1037 = vmatprep.subr.mxu0 0.0
    %1038 = vmatpush1.msra.mxu0 0.0
    %1039 = vmatprep.mubr.f32.mxu0 0.0
    %1040 = vmatmul.mubr.f32.gmra.mrb[0].mxu0 %v973
    %v1041 = vpop.f32.mrb[0].mxu0
    %v1042 = vadd.f32 0.0, %v1041
    %v1043 = vpop.f32.mrb[0].mxu0
    %1044 = vdwg.mxu0
    %v1045 = vadd.f32 %v972, %v1042
    %v1046 = vxor.u32 %v1045, 2147483648
    %v1047 = vmul.f32 %v1046, 1.442695
    %v1048 = vpow.pop %v1047
    %v1049 = vadd.f32 %v1048, 1.0
    %v1050 = vrcp.pop %v1049
    %v1051 = vmul.f32 1.0, %v1050
    %v1052 = vtanh.pop %v1045
    %v1053 = vmul.f32 %v1051, %v958
    %1055 = vrot.lane.b32.xlu0 %v1052, 64
    %v1056 = vpop.permute.xlu0 %1055
    %v1058 = vmul.f32 %v1051, %v1056
    %1060 = vrot.lane.b32.xlu0 %v1058, 32
    %v1061 = vpop.permute.xlu0 %1060
    %v1063 = vadd.f32 %v1053, %v1061
    %v1064 = vtanh.pop %v1063
    %1066 = vrot.lane.b32.xlu0 %v1064, 64
    %v1067 = vpop.permute.xlu0 %1066
    %v1069 = vmul.f32 %v1051, %v1067
    %1071 = vrot.lane.b32.xlu0 %v1069, 32
    %v1072 = vpop.permute.xlu0 %1071
    %s1074 = scalar_lea.vmem [#allocation3], 12
    %1075 = vst.msk [vmem:[%s1074] sm:$0x3] %vm444, %v1072
    %s1076 = scalar_lea.vmem [#allocation2], 14
    %v1077 = vld [vmem:[%s1076] sm:$0x3]
    %v1078 = vsel %vm199, %v1072, 0
    %1080 = vmatprep.subr.mxu0 0.0
    %1081 = vmatpush1.msra.mxu0 %v331
    %1082 = vmatprep.subr.mxu0 0.0
    %1083 = vmatpush1.msra.mxu0 %v332
    %1084 = vmatprep.subr.mxu0 0.0
    %1085 = vmatpush1.msra.mxu0 %v333
    %1086 = vmatprep.subr.mxu0 0.0
    %1087 = vmatpush1.msra.mxu0 %v334
    %1088 = vmatprep.subr.mxu0 0.0
    %1089 = vmatpush1.msra.mxu0 0.0
    %1090 = vmatprep.subr.mxu0 0.0
    %1091 = vmatpush1.msra.mxu0 0.0
    %1092 = vmatprep.subr.mxu0 0.0
    %1093 = vmatpush1.msra.mxu0 0.0
    %1094 = vmatprep.subr.mxu0 0.0
    %1095 = vmatpush1.msra.mxu0 0.0
    %1096 = vmatprep.subr.mxu0 0.0
    %1097 = vmatpush1.msra.mxu0 0.0
    %1098 = vmatprep.subr.mxu0 0.0
    %1099 = vmatpush1.msra.mxu0 0.0
    %1100 = vmatprep.subr.mxu0 0.0
    %1101 = vmatpush1.msra.mxu0 0.0
    %1102 = vmatprep.subr.mxu0 0.0
    %1103 = vmatpush1.msra.mxu0 0.0
    %1104 = vmatprep.subr.mxu0 0.0
    %1105 = vmatpush1.msra.mxu0 0.0
    %1106 = vmatprep.subr.mxu0 0.0
    %1107 = vmatpush1.msra.mxu0 0.0
    %1108 = vmatprep.subr.mxu0 0.0
    %1109 = vmatpush1.msra.mxu0 0.0
    %1110 = vmatprep.subr.mxu0 0.0
    %1111 = vmatpush1.msra.mxu0 0.0
    %1112 = vmatprep.subr.mxu0 0.0
    %1113 = vmatpush1.msra.mxu0 0.0
    %1114 = vmatprep.subr.mxu0 0.0
    %1115 = vmatpush1.msra.mxu0 0.0
    %1116 = vmatprep.subr.mxu0 0.0
    %1117 = vmatpush1.msra.mxu0 0.0
    %1118 = vmatprep.subr.mxu0 0.0
    %1119 = vmatpush1.msra.mxu0 0.0
    %1120 = vmatprep.subr.mxu0 0.0
    %1121 = vmatpush1.msra.mxu0 0.0
    %1122 = vmatprep.subr.mxu0 0.0
    %1123 = vmatpush1.msra.mxu0 0.0
    %1124 = vmatprep.subr.mxu0 0.0
    %1125 = vmatpush1.msra.mxu0 0.0
    %1126 = vmatprep.subr.mxu0 0.0
    %1127 = vmatpush1.msra.mxu0 0.0
    %1128 = vmatprep.subr.mxu0 0.0
    %1129 = vmatpush1.msra.mxu0 0.0
    %1130 = vmatprep.subr.mxu0 0.0
    %1131 = vmatpush1.msra.mxu0 0.0
    %1132 = vmatprep.subr.mxu0 0.0
    %1133 = vmatpush1.msra.mxu0 0.0
    %1134 = vmatprep.subr.mxu0 0.0
    %1135 = vmatpush1.msra.mxu0 0.0
    %1136 = vmatprep.subr.mxu0 0.0
    %1137 = vmatpush1.msra.mxu0 0.0
    %1138 = vmatprep.subr.mxu0 0.0
    %1139 = vmatpush1.msra.mxu0 0.0
    %1140 = vmatprep.subr.mxu0 0.0
    %1141 = vmatpush1.msra.mxu0 0.0
    %1142 = vmatprep.subr.mxu0 0.0
    %1143 = vmatpush1.msra.mxu0 0.0
    %1144 = vmatprep.mubr.f32.mxu0 0.0
    %1145 = vmatmul.mubr.f32.gmra.mrb[0].mxu0 %v1078
    %v1146 = vpop.f32.mrb[0].mxu0
    %v1147 = vadd.f32 0.0, %v1146
    %v1148 = vpop.f32.mrb[0].mxu0
    %1149 = vdwg.mxu0
    %v1150 = vadd.f32 %v1077, %v1147
    %v1151 = vxor.u32 %v1150, 2147483648
    %v1152 = vmul.f32 %v1151, 1.442695
    %v1153 = vpow.pop %v1152
    %v1154 = vadd.f32 %v1153, 1.0
    %v1155 = vrcp.pop %v1154
    %v1156 = vmul.f32 1.0, %v1155
    %v1157 = vtanh.pop %v1150
    %v1158 = vmul.f32 %v1156, %v1063
    %1160 = vrot.lane.b32.xlu0 %v1157, 64
    %v1161 = vpop.permute.xlu0 %1160
    %v1163 = vmul.f32 %v1156, %v1161
    %1165 = vrot.lane.b32.xlu0 %v1163, 32
    %v1166 = vpop.permute.xlu0 %1165
    %v1168 = vadd.f32 %v1158, %v1166
    %v1169 = vtanh.pop %v1168
    %1171 = vrot.lane.b32.xlu0 %v1169, 64
    %v1172 = vpop.permute.xlu0 %1171
    %v1174 = vmul.f32 %v1156, %v1172
    %1176 = vrot.lane.b32.xlu0 %v1174, 32
    %v1177 = vpop.permute.xlu0 %1176
    %s1179 = scalar_lea.vmem [#allocation3], 14
    %1180 = vst.msk [vmem:[%s1179] sm:$0x3] %vm444, %v1177
    %1181 = vst.msk [vmem:[#allocation4] sm:$0x3] %vm444, %v1177
    %1183 = vrot.lane.b32.xlu0 %v1168, 96
    %v1184 = vpop.permute.xlu0 %1183
    %1186 = vst.msk [vmem:[#allocation5] sm:$0x3] %vm444, %v1184
    %v1187 = vld [vmem:[#allocation3] sm:$0x3]
    %v1188 = vld [vmem:[#allocation3 + $0x2] sm:$0x3]
    %v1189 = vld [vmem:[#allocation3 + $0x4] sm:$0x3]
    %v1190 = vld [vmem:[#allocation3 + $0x6] sm:$0x3]
    %v1191 = vld [vmem:[#allocation3 + $0x8] sm:$0x3]
    %v1192 = vld [vmem:[#allocation3 + $0xa] sm:$0x3]
    %v1193 = vld [vmem:[#allocation3 + $0xc] sm:$0x3]
    %v1194 = vld [vmem:[#allocation3 + $0xe] sm:$0x3]
    %v1195 = vcombine.low %v1187, %v1189
    %v1197 = vunpack.c.l.s4 1983009808
    %v1198 = vunpack.c.0.s8 %v1197
    %v1199 = vlaneseq
    %v1200 = vshrl.u32 %v1199, 7
    %v1201 = vsub.s32 %v1198, %v1200
    %v1202 = vrot.slane %v1195, %v1201
    %v1203 = vcombine.low %v1188, %v1190
    %v1205 = vunpack.c.l.s4 1983009808
    %v1206 = vunpack.c.0.s8 %v1205
    %v1207 = vlaneseq
    %v1208 = vshrl.u32 %v1207, 7
    %v1209 = vsub.s32 %v1206, %v1208
    %v1210 = vrot.slane %v1203, %v1209
    %v1211 = vcombine.low %v1191, %v1193
    %v1213 = vunpack.c.l.s4 1983009808
    %v1214 = vunpack.c.0.s8 %v1213
    %v1215 = vlaneseq
    %v1216 = vshrl.u32 %v1215, 7
    %v1217 = vsub.s32 %v1214, %v1216
    %v1218 = vrot.slane %v1211, %v1217
    %v1219 = vcombine.low %v1192, %v1194
    %v1221 = vunpack.c.l.s4 1983009808
    %v1222 = vunpack.c.0.s8 %v1221
    %v1223 = vlaneseq
    %v1224 = vshrl.u32 %v1223, 7
    %v1225 = vsub.s32 %v1222, %v1224
    %v1226 = vrot.slane %v1219, %v1225
    %v1227 = vcombine.low %v1202, %v1210
    %v1229 = vunpack.c.l.s4 1934713408
    %v1230 = vunpack.c.0.s8 %v1229
    %v1231 = vlaneseq
    %v1232 = vshrl.u32 %v1231, 7
    %v1233 = vsub.s32 %v1230, %v1232
    %v1234 = vrot.slane %v1227, %v1233
    %v1235 = vcombine.low %v1218, %v1226
    %v1237 = vunpack.c.l.s4 1934713408
    %v1238 = vunpack.c.0.s8 %v1237
    %v1239 = vlaneseq
    %v1240 = vshrl.u32 %v1239, 7
    %v1241 = vsub.s32 %v1238, %v1240
    %v1242 = vrot.slane %v1235, %v1241
    %v1243 = vcombine.low %v1234, %v1242
    %v1244 = vcombine.high %v1234, %v1242
    %1245 = vst.msk [vmem:[#allocation12] sm:$0xff] %vm199, %v1243
    %1246 = vst.msk [vmem:[#allocation12 + $0x8] sm:$0xff] %vm199, %v1244
    // Predicated region
    $region42: #{tpu_custom_call.1} parent=1 // pred_check
      %p1247 = pneg %p69
    $region43: #{tpu_custom_call.1} parent=1 // pred_check_branch
      %1249 = sbr.rel (%p1247) target = $region45
    $region44: #{tpu_custom_call.1} parent=1 // pred_region
      %1250 = vst.msk [vmem:[#allocation13] sm:$0x3] %vm444, %v1177
      %1251 = vst.msk [vmem:[#allocation15] sm:$0x3] %vm444, %v1184
    $region45: #{tpu_custom_call.1} parent=1 // pred_fallthru
      _
    // Predicated region
    $region46: #{tpu_custom_call.1} parent=1 // pred_check
      _
    $region47: #{tpu_custom_call.1} parent=1 // pred_check_branch
      %1253 = sbr.rel (0) target = $region49
    $region48: #{tpu_custom_call.1} parent=1 // pred_region
      %s1255 = ssub.s32 256, 256
      %1256 = vsyncadd [#allocation8], %s1255
      %s1257 = sshll.u32 [#allocation12], 4
      %s1258 = int_to_ptr.vmem [resolvable:$true] %s1257
      %1263 = dma.vmem_to_hbm [thread:$0]  %s1258, 256, %s6, [#allocation8], 128, 128, 8
    $region49: #{tpu_custom_call.1} parent=1 // pred_fallthru
      _
    // Predicated region
    $region50: #{tpu_custom_call.1} parent=1 // pred_check
      _
    $region51: #{tpu_custom_call.1} parent=1 // pred_check_branch
      %1265 = sbr.rel (0) target = $region53
    $region52: #{tpu_custom_call.1} parent=1 // pred_region
      %s1267 = ssub.s32 32, 32
      %1268 = vsyncadd [#allocation14], %s1267
      %s1270 = sshll.u32 [#allocation13], 4
      %s1271 = int_to_ptr.vmem [resolvable:$true] %s1270
      %1273 = dma.vmem_to_hbm [thread:$0]  %s1271, 32, %s7, [#allocation14]
    $region53: #{tpu_custom_call.1} parent=1 // pred_fallthru
      _
    // Predicated region
    $region54: #{tpu_custom_call.1} parent=1 // pred_check
      _
    $region55: #{tpu_custom_call.1} parent=1 // pred_check_branch
      %1275 = sbr.rel (0) target = $region57
    $region56: #{tpu_custom_call.1} parent=1 // pred_region
      %s1277 = ssub.s32 32, 32
      %1278 = vsyncadd [#allocation14], %s1277
      %s1280 = sshll.u32 [#allocation15], 4
      %s1281 = int_to_ptr.vmem [resolvable:$true] %s1280
      %1283 = dma.vmem_to_hbm [thread:$0]  %s1281, 32, %s8, [#allocation14]
    $region57: #{tpu_custom_call.1} parent=1 // pred_fallthru
      _
    // Predicated region
    $region58: #{tpu_custom_call.1} parent=1 // pred_check
      _
    $region59: #{tpu_custom_call.1} parent=1 // pred_check_branch
      %1285 = sbr.rel (0) target = $region61
    $region60: #{tpu_custom_call.1} parent=1 // pred_region
      %1286 = dma.done [#allocation8], 256
    $region61: #{tpu_custom_call.1} parent=1 // pred_fallthru
      _
    // Predicated region
    $region62: #{tpu_custom_call.1} parent=1 // pred_check
      _
    $region63: #{tpu_custom_call.1} parent=1 // pred_check_branch
      %1288 = sbr.rel (0) target = $region65
    $region64: #{tpu_custom_call.1} parent=1 // pred_region
      %1289 = dma.done [#allocation14], 32
    $region65: #{tpu_custom_call.1} parent=1 // pred_fallthru
      _
    // Predicated region
    $region66: #{tpu_custom_call.1} parent=1 // pred_check
      _
    $region67: #{tpu_custom_call.1} parent=1 // pred_check_branch
      %1291 = sbr.rel (0) target = $region69
    $region68: #{tpu_custom_call.1} parent=1 // pred_region
      %1292 = dma.done [#allocation14], 32
    $region69: #{tpu_custom_call.1} parent=1 // pred_fallthru
      _
    %1293 = vsyncpa [#allocation7], 1
    %1294 = vsyncpa [#allocation10], 1
    %1295 = vsyncpa [#allocation8], 1
    %1296 = vsyncpa [#allocation14], 1

</llo_original>
